<compile_context>
chip_gen: v7x
topology: tpu7x:2x2x1
jax: 0.10.0
libtpu: 0.0.40
codegen_flags: <defaults>
</compile_context>

<pallas_src>
import functools

import jax
import jax.numpy as jnp
from jax import lax
from jax.experimental import pallas as pl
from jax.experimental.pallas import tpu as pltpu


def _traj_grader_kernel(det_ref, trajf_ref, *refs, lstm_chunk):
    (w_comb, b_comb, w_hh,
     w_t1, b_t1, w_t2, b_t2, w_t3, b_t3,
     w_d1_det, w_d1_traj, b_d1, w_d2, b_d2, w_d3, b_d3,
     out_ref, xg_scr) = refs

    T, Bb, D = det_ref.shape
    H = w_hh.shape[0]

    def mm(a, w_ref):
        # MXU matmul; operand dtype follows the weight (bf16 or f32), accumulate in f32.
        return jnp.dot(a.astype(w_ref.dtype), w_ref[...],
                       preferred_element_type=jnp.float32)

    # ---- EncoderRNN prologue: single batched gate projection (input Linear folded in) ----
    x = det_ref[...].reshape(T * Bb, D)                       # time-major rows (T*Bb, D)
    xg_scr[...] = mm(x, w_comb) + b_comb[...]                 # x-gate cache (T*Bb, 4H), f32

    # ---- LSTM recurrence: only h @ W_hh (f32) on the serial path, chunked over batch ----
    n_chunks = Bb // lstm_chunk
    h_parts = []
    for chunk_idx in range(n_chunks):
        row0 = chunk_idx * lstm_chunk

        def step(t, carry, _row0=row0):
            h, c = carry
            base = pl.multiple_of(t * Bb + _row0, 8)
            g = xg_scr[pl.ds(base, lstm_chunk), :] + mm(h, w_hh)      # (chunk, 4H)
            s = jax.nn.sigmoid(g)               # ONE lane-dense EUP pass over all 4 gates
            i = s[:, 0 * H:1 * H]
            f = s[:, 1 * H:2 * H]
            gg = 2.0 * s[:, 2 * H:3 * H] - 1.0  # tanh(a) == 2*sigmoid(2a)-1 (cols pre-scaled x2)
            o = s[:, 3 * H:4 * H]
            c_new = f * c + i * gg
            h_new = o * jnp.tanh(c_new)
            return h_new, c_new

        h0 = jnp.zeros((lstm_chunk, H), jnp.float32)
        c0 = jnp.zeros((lstm_chunk, H), jnp.float32)
        h_c, _ = lax.fori_loop(0, T, step, (h0, c0), unroll=True)     # small fixed T
        h_parts.append(h_c)
    h = h_parts[0] if n_chunks == 1 else jnp.concatenate(h_parts, axis=0)   # (Bb, H)

    # ---- TrajEncoder MLP ----
    tx = trajf_ref[...]                                       # (Bb, tinput_dim)
    t1 = jax.nn.relu(mm(tx, w_t1) + b_t1[...])
    t2 = jax.nn.relu(mm(t1, w_t2) + b_t2[...])
    t3 = jax.nn.relu(mm(t2, w_t3) + b_t3[...])

    # ---- GraderDecoder on concat([h, t3]); concat folded into split fc1 matmuls ----
    d1 = jax.nn.relu(mm(h, w_d1_det) + mm(t3, w_d1_traj) + b_d1[...])
    d2 = jax.nn.relu(mm(d1, w_d2) + b_d2[...])
    out = jnp.tanh(mm(d2, w_d3) + b_d3[...])
    out_ref[...] = out.astype(out_ref.dtype)


def traj_grader_net_forward(detections, traj, params, *,
                            matmul_dtype=jnp.bfloat16,
                            batch_block=256, lstm_chunk=128):
    """detections: (B, T, dinput_dim) f32; traj: (B, ...) f32 (flattened like X.view(B, -1)).
    Returns est_rew: (B, out_dim) f32."""
    B, T, D = detections.shape
    traj_flat = traj.reshape(B, -1)
    TIN = traj_flat.shape[1]
    H = params["w_in"].shape[1]
    OUT = params["w_d3"].shape[1]
    f32 = jnp.float32

    # ---- batch block sizing: sublane-multiple, clamped to the (padded) batch ----
    B8 = ((B + 7) // 8) * 8
    bb = max(8, (min(batch_block, B8) // 8) * 8)
    Bp = ((B8 + bb - 1) // bb) * bb
    chunk = max(8, (min(lstm_chunk, bb) // 8) * 8)
    if bb % chunk != 0:
        chunk = bb
    n_bblk = Bp // bb

    # ---- pad batch, pre-cast inputs to the MXU operand dtype (halves DMA for bf16) ----
    detections = detections.astype(matmul_dtype)
    traj_flat = traj_flat.astype(matmul_dtype)
    if Bp != B:
        detections = jnp.pad(detections, ((0, Bp - B), (0, 0), (0, 0)))
        traj_flat = jnp.pad(traj_flat, ((0, Bp - B), (0, 0)))
    det_tm = jnp.transpose(detections, (1, 0, 2))             # (T, Bp, D) time-major

    # ---- host-side parameter prep (all in f32, cast to bf16 only at the end) ----
    w_in = params["w_in"].astype(f32)
    b_in = params["b_in"].astype(f32)
    w_ih = params["w_ih"].astype(f32)
    w_hh = params["w_hh"].astype(f32)
    b_lstm = params["b_lstm"].astype(f32)

    # Fold the input Linear into the gate projection (exact: no nonlinearity in between).
    w_comb = w_in @ w_ih                                      # (D, 4H)
    b_comb = b_in @ w_ih + b_lstm                             # (1, 4H)
    # Pre-scale the cell(g)-gate columns by 2 so in-kernel tanh(a) = 2*sigmoid(2a)-1.
    scale = jnp.ones((1, 4 * H), f32).at[:, 2 * H:3 * H].set(2.0)
    w_comb = w_comb * scale
    w_hh_s = w_hh * scale                                     # kept f32 for the recurrence
    b_comb = b_comb * scale

    def wcast(k):
        return params[k].astype(matmul_dtype)

    def bcast(k):
        return params[k].astype(f32)

    flat_params = [
        w_comb.astype(matmul_dtype), b_comb, w_hh_s,
        wcast("w_t1"), bcast("b_t1"), wcast("w_t2"), bcast("b_t2"),
        wcast("w_t3"), bcast("b_t3"),
        wcast("w_d1_det"), wcast("w_d1_traj"), bcast("b_d1"),
        wcast("w_d2"), bcast("b_d2"), wcast("w_d3"), bcast("b_d3"),
    ]
    weight_specs = [pl.BlockSpec(p.shape, lambda b: (0, 0)) for p in flat_params]

    kernel = functools.partial(_traj_grader_kernel, lstm_chunk=chunk)

    out = pl.pallas_call(
        kernel,
        out_shape=jax.ShapeDtypeStruct((Bp, OUT), jnp.float32),
        grid_spec=pltpu.PrefetchScalarGridSpec(
            num_scalar_prefetch=0,
            grid=(n_bblk,),                                   # independent batch blocks only
            in_specs=[
                pl.BlockSpec((T, bb, D), lambda b: (0, b, 0)),    # full sequence, one DMA
                pl.BlockSpec((bb, TIN), lambda b: (b, 0)),        # flattened traj
            ] + weight_specs,                                      # resident weights
            out_specs=pl.BlockSpec((bb, OUT), lambda b: (b, 0)),
            scratch_shapes=[pltpu.VMEM((T * bb, 4 * H), jnp.float32)],   # 2-D x-gate cache
        ),
        compiler_params=pltpu.CompilerParams(
            dimension_semantics=("parallel",),    # batch sharding across megacore / v7x 2 TCs
        ),
    )(det_tm, traj_flat, *flat_params)
    return out[:B]


def init_params(key, dinput_dim, tinput_dim, hidden_dim, out_dim):
    """Deterministic synthetic parameters (PyTorch-style uniform init bounds)."""
    ks = list(jax.random.split(key, 20))
    it = iter(ks)
    u = lambda k, shape, bound: jax.random.uniform(
        k, shape, jnp.float32, minval=-bound, maxval=bound)
    kd = 1.0 / float(dinput_dim) ** 0.5
    kt = 1.0 / float(tinput_dim) ** 0.5
    kh = 1.0 / float(hidden_dim) ** 0.5
    k2h = 1.0 / float(2 * hidden_dim) ** 0.5
    return {
        # EncoderRNN: Linear(dinput->H) then LSTM(H, H); weights stored transposed.
        "w_in":      u(next(it), (dinput_dim, hidden_dim), kd),
        "b_in":      u(next(it), (1, hidden_dim), kd),
        "w_ih":      u(next(it), (hidden_dim, 4 * hidden_dim), kh),
        "w_hh":      u(next(it), (hidden_dim, 4 * hidden_dim), kh),
        "b_lstm":    u(next(it), (1, 4 * hidden_dim), kh)
                     + u(next(it), (1, 4 * hidden_dim), kh),              # b_ih + b_hh
        # TrajEncoder
        "w_t1":      u(next(it), (tinput_dim, hidden_dim), kt),
        "b_t1":      u(next(it), (1, hidden_dim), kt),
        "w_t2":      u(next(it), (hidden_dim, hidden_dim), kh),
        "b_t2":      u(next(it), (1, hidden_dim), kh),
        "w_t3":      u(next(it), (hidden_dim, hidden_dim), kh),
        "b_t3":      u(next(it), (1, hidden_dim), kh),
        # GraderDecoder: fc1 weight (2H, H) split row-wise into det/traj halves.
        "w_d1_det":  u(next(it), (hidden_dim, hidden_dim), k2h),
        "w_d1_traj": u(next(it), (hidden_dim, hidden_dim), k2h),
        "b_d1":      u(next(it), (1, hidden_dim), k2h),
        "w_d2":      u(next(it), (hidden_dim, hidden_dim), kh),
        "b_d2":      u(next(it), (1, hidden_dim), kh),
        "w_d3":      u(next(it), (hidden_dim, out_dim), 0.003),           # constrain_out=True
        "b_d3":      u(next(it), (1, out_dim), kh),
    }


def reference_forward(detections, traj, params):
    """Pure-JAX reference of TrajGraderNet.forward for correctness checking."""
    H = params["w_in"].shape[1]
    B, T, _ = detections.shape

    # EncoderRNN: per-step Linear, then LSTM, take final hidden state.
    x = detections @ params["w_in"] + params["b_in"]          # (B, T, H)
    h = jnp.zeros((B, H), jnp.float32)
    c = jnp.zeros((B, H), jnp.float32)
    for t in range(T):
        gates = x[:, t] @ params["w_ih"] + h @ params["w_hh"] + params["b_lstm"]
        i = jax.nn.sigmoid(gates[:, 0 * H:1 * H])
        f = jax.nn.sigmoid(gates[:, 1 * H:2 * H])
        g = jnp.tanh(gates[:, 2 * H:3 * H])
        o = jax.nn.sigmoid(gates[:, 3 * H:4 * H])
        c = f * c + i * g
        h = o * jnp.tanh(c)
    det_emb = h                                               # (B, H)

    # TrajEncoder
    tf = traj.reshape(B, -1)
    t1 = jax.nn.relu(tf @ params["w_t1"] + params["b_t1"])
    t2 = jax.nn.relu(t1 @ params["w_t2"] + params["b_t2"])
    t3 = jax.nn.relu(t2 @ params["w_t3"] + params["b_t3"])

    # concat + GraderDecoder (fc1 weight is the stacked [det; traj] halves)
    emb = jnp.concatenate([det_emb, t3], axis=-1)             # (B, 2H)
    w_d1 = jnp.concatenate([params["w_d1_det"], params["w_d1_traj"]], axis=0)
    d1 = jax.nn.relu(emb @ w_d1 + params["b_d1"])
    d2 = jax.nn.relu(d1 @ params["w_d2"] + params["b_d2"])
    return jnp.tanh(d2 @ params["w_d3"] + params["b_d3"])     # (B, out_dim)


if __name__ == "__main__":
    B, T = 2, 8                 # batch, detection sequence length
    D_DET = 6                   # dinput_dim
    T_TRAJ, D_TRAJ = 8, 4       # traj (B, 8, 4) -> flattened tinput_dim = 32
    HIDDEN = 32
    OUT_DIM = 1

    key = jax.random.PRNGKey(0)
    k_det, k_traj, k_par = jax.random.split(key, 3)
    detections = jax.random.normal(k_det, (B, T, D_DET), jnp.float32)
    traj = jax.random.normal(k_traj, (B, T_TRAJ, D_TRAJ), jnp.float32)
    params = init_params(k_par, D_DET, T_TRAJ * D_TRAJ, HIDDEN, OUT_DIM)

    ref = reference_forward(detections, traj, params)

    # f32 path (fold + sigmoid-tanh rewrite are exact; only fp reassociation differs)
    est = jax.block_until_ready(
        traj_grader_net_forward(detections, traj, params, matmul_dtype=jnp.float32))
    assert est.shape == (B, OUT_DIM)
    assert jnp.allclose(est, ref, atol=1e-3, rtol=1e-3)

    # bf16 MXU-operand path (default; f32 accumulation, f32 recurrent matmul, f32 gates)
    est_bf16 = jax.block_until_ready(traj_grader_net_forward(detections, traj, params))
    assert est_bf16.shape == (B, OUT_DIM)
    assert jnp.allclose(est_bf16, ref, atol=1e-1, rtol=1e-1)

    # Larger batch: exercises multi-block grid, batch padding and the chunked recurrence.
    B2 = 24
    k_det2, k_traj2 = jax.random.split(jax.random.PRNGKey(1), 2)
    det2 = jax.random.normal(k_det2, (B2, T, D_DET), jnp.float32)
    traj2 = jax.random.normal(k_traj2, (B2, T_TRAJ, D_TRAJ), jnp.float32)
    ref2 = reference_forward(det2, traj2, params)
    est2 = jax.block_until_ready(
        traj_grader_net_forward(det2, traj2, params, matmul_dtype=jnp.float32,
                                batch_block=16, lstm_chunk=8))
    assert est2.shape == (B2, OUT_DIM)
    assert jnp.allclose(est2, ref2, atol=1e-3, rtol=1e-3)

    print("KERNEL_OK")
</pallas_src>

<mosaic_0001>
module attributes {stable_mosaic.version = 11 : i64} {
  func.func @_traj_grader_kernel(%arg0: i32, %arg1: memref<8x8x6xf32, #tpu.memory_space<vmem>>, %arg2: memref<8x32xf32, #tpu.memory_space<vmem>>, %arg3: memref<6x128xf32, #tpu.memory_space<vmem>>, %arg4: memref<1x128xf32, #tpu.memory_space<vmem>>, %arg5: memref<32x128xf32, #tpu.memory_space<vmem>>, %arg6: memref<32x32xf32, #tpu.memory_space<vmem>>, %arg7: memref<1x32xf32, #tpu.memory_space<vmem>>, %arg8: memref<32x32xf32, #tpu.memory_space<vmem>>, %arg9: memref<1x32xf32, #tpu.memory_space<vmem>>, %arg10: memref<32x32xf32, #tpu.memory_space<vmem>>, %arg11: memref<1x32xf32, #tpu.memory_space<vmem>>, %arg12: memref<32x32xf32, #tpu.memory_space<vmem>>, %arg13: memref<32x32xf32, #tpu.memory_space<vmem>>, %arg14: memref<1x32xf32, #tpu.memory_space<vmem>>, %arg15: memref<32x32xf32, #tpu.memory_space<vmem>>, %arg16: memref<1x32xf32, #tpu.memory_space<vmem>>, %arg17: memref<32x1xf32, #tpu.memory_space<vmem>>, %arg18: memref<1x1xf32, #tpu.memory_space<vmem>>, %arg19: memref<8x1xf32, #tpu.memory_space<vmem>>, %arg20: memref<64x128xf32, #tpu.memory_space<vmem>>) attributes {dimension_semantics = [#tpu.dimension_semantics<parallel>], iteration_bounds = array<i64: 1>, scalar_prefetch = 0 : i64, scratch_operands = 1 : i64, tpu.core_type = #tpu.core_type<tc>, window_params = [{transform_indices = @transform_0, window_bounds = array<i64: 8, 8, 6>}, {transform_indices = @transform_1, window_bounds = array<i64: 8, 32>}, {pipeline_mode = #tpu.pipeline_mode<synchronous>, transform_indices = @transform_2, window_bounds = array<i64: 6, 128>}, {pipeline_mode = #tpu.pipeline_mode<synchronous>, transform_indices = @transform_3, window_bounds = array<i64: 1, 128>}, {pipeline_mode = #tpu.pipeline_mode<synchronous>, transform_indices = @transform_4, window_bounds = array<i64: 32, 128>}, {pipeline_mode = #tpu.pipeline_mode<synchronous>, transform_indices = @transform_5, window_bounds = array<i64: 32, 32>}, {pipeline_mode = #tpu.pipeline_mode<synchronous>, transform_indices = @transform_6, window_bounds = array<i64: 1, 32>}, {pipeline_mode = #tpu.pipeline_mode<synchronous>, transform_indices = @transform_7, window_bounds = array<i64: 32, 32>}, {pipeline_mode = #tpu.pipeline_mode<synchronous>, transform_indices = @transform_8, window_bounds = array<i64: 1, 32>}, {pipeline_mode = #tpu.pipeline_mode<synchronous>, transform_indices = @transform_9, window_bounds = array<i64: 32, 32>}, {pipeline_mode = #tpu.pipeline_mode<synchronous>, transform_indices = @transform_10, window_bounds = array<i64: 1, 32>}, {pipeline_mode = #tpu.pipeline_mode<synchronous>, transform_indices = @transform_11, window_bounds = array<i64: 32, 32>}, {pipeline_mode = #tpu.pipeline_mode<synchronous>, transform_indices = @transform_12, window_bounds = array<i64: 32, 32>}, {pipeline_mode = #tpu.pipeline_mode<synchronous>, transform_indices = @transform_13, window_bounds = array<i64: 1, 32>}, {pipeline_mode = #tpu.pipeline_mode<synchronous>, transform_indices = @transform_14, window_bounds = array<i64: 32, 32>}, {pipeline_mode = #tpu.pipeline_mode<synchronous>, transform_indices = @transform_15, window_bounds = array<i64: 1, 32>}, {pipeline_mode = #tpu.pipeline_mode<synchronous>, transform_indices = @transform_16, window_bounds = array<i64: 32, 1>}, {pipeline_mode = #tpu.pipeline_mode<synchronous>, transform_indices = @transform_17, window_bounds = array<i64: 1, 1>}, {transform_indices = @transform_18, window_bounds = array<i64: 8, 1>}]} {
    %c0 = arith.constant 0 : index
    %c0_0 = arith.constant 0 : index
    %c0_1 = arith.constant 0 : index
    %0 = vector.load %arg1[%c0, %c0_0, %c0_1] : memref<8x8x6xf32, #tpu.memory_space<vmem>>, vector<8x8x6xf32>
    %1 = vector.shape_cast %0 : vector<8x8x6xf32> to vector<64x6xf32>
    %c0_2 = arith.constant 0 : index
    %c0_3 = arith.constant 0 : index
    %2 = vector.load %arg3[%c0_2, %c0_3] : memref<6x128xf32, #tpu.memory_space<vmem>>, vector<6x128xf32>
    %cst = arith.constant dense<0.000000e+00> : vector<64x128xf32>
    %3 = tpu.matmul %1, %2, %cst {dimension_numbers = #tpu.dot_dimension_numbers<[1], [0], [0], [1], [0, 0, 1, 1], [], []>} : vector<64x6xf32>, vector<6x128xf32>, vector<64x128xf32> -> vector<64x128xf32>
    %c0_4 = arith.constant 0 : index
    %c0_5 = arith.constant 0 : index
    %4 = vector.load %arg4[%c0_4, %c0_5] : memref<1x128xf32, #tpu.memory_space<vmem>>, vector<1x128xf32>
    %5 = vector.broadcast %4 : vector<1x128xf32> to vector<64x128xf32>
    %6 = arith.addf %3, %5 : vector<64x128xf32>
    %c0_6 = arith.constant 0 : index
    %c0_7 = arith.constant 0 : index
    %7 = vector.load %arg20[%c0_6, %c0_7] : memref<64x128xf32, #tpu.memory_space<vmem>>, vector<64x128xf32>
    tpu.vector_store %arg20[%c0_6, %c0_7], %6 {strides = array<i32>} : memref<64x128xf32, #tpu.memory_space<vmem>>, vector<64x128xf32>,
    %cst_8 = arith.constant 0.000000e+00 : f32
    %8 = vector.broadcast %cst_8 : f32 to vector<8x32xf32>
    %cst_9 = arith.constant 0.000000e+00 : f32
    %9 = vector.broadcast %cst_9 : f32 to vector<8x32xf32>
    %c0_i32 = arith.constant 0 : i32
    %c8_i32 = arith.constant 8 : i32
    %10 = arith.muli %c0_i32, %c8_i32 : i32
    %c0_i32_10 = arith.constant 0 : i32
    %11 = arith.addi %10, %c0_i32_10 : i32
    %12 = tpu.assume_multiple %11, 8 : i32
    %13 = arith.index_cast %12 : i32 to index
    %c0_11 = arith.constant 0 : index
    %14 = vector.load %arg20[%13, %c0_11] : memref<64x128xf32, #tpu.memory_space<vmem>>, vector<8x128xf32>
    %c0_12 = arith.constant 0 : index
    %c0_13 = arith.constant 0 : index
    %15 = vector.load %arg5[%c0_12, %c0_13] : memref<32x128xf32, #tpu.memory_space<vmem>>, vector<32x128xf32>
    %cst_14 = arith.constant dense<0.000000e+00> : vector<8x128xf32>
    %16 = tpu.matmul %8, %15, %cst_14 {dimension_numbers = #tpu.dot_dimension_numbers<[1], [0], [0], [1], [0, 0, 1, 1], [], []>} : vector<8x32xf32>, vector<32x128xf32>, vector<8x128xf32> -> vector<8x128xf32>
    %17 = arith.addf %14, %16 : vector<8x128xf32>
    %18 = arith.negf %17 : vector<8x128xf32>
    %19 = math.exp %18 : vector<8x128xf32>
    %cst_15 = arith.constant 1.000000e+00 : f32
    %20 = vector.broadcast %cst_15 : f32 to vector<8x128xf32>
    %21 = arith.addf %20, %19 : vector<8x128xf32>
    %22 = arith.divf %20, %21 : vector<8x128xf32>
    %23 = vector.extract_strided_slice %22 {offsets = [0, 0], sizes = [8, 32], strides = [1, 1]} : vector<8x128xf32> to vector<8x32xf32>
    %24 = vector.extract_strided_slice %22 {offsets = [0, 32], sizes = [8, 32], strides = [1, 1]} : vector<8x128xf32> to vector<8x32xf32>
    %25 = vector.extract_strided_slice %22 {offsets = [0, 64], sizes = [8, 32], strides = [1, 1]} : vector<8x128xf32> to vector<8x32xf32>
    %cst_16 = arith.constant 2.000000e+00 : f32
    %26 = vector.broadcast %cst_16 : f32 to vector<8x32xf32>
    %27 = arith.mulf %26, %25 : vector<8x32xf32>
    %cst_17 = arith.constant 1.000000e+00 : f32
    %28 = vector.broadcast %cst_17 : f32 to vector<8x32xf32>
    %29 = arith.subf %27, %28 : vector<8x32xf32>
    %30 = vector.extract_strided_slice %22 {offsets = [0, 96], sizes = [8, 32], strides = [1, 1]} : vector<8x128xf32> to vector<8x32xf32>
    %31 = arith.mulf %24, %9 : vector<8x32xf32>
    %32 = arith.mulf %23, %29 : vector<8x32xf32>
    %33 = arith.addf %31, %32 : vector<8x32xf32>
    %34 = math.tanh %33 : vector<8x32xf32>
    %35 = arith.mulf %30, %34 : vector<8x32xf32>
    %c1_i32 = arith.constant 1 : i32
    %c8_i32_18 = arith.constant 8 : i32
    %36 = arith.muli %c1_i32, %c8_i32_18 : i32
    %c0_i32_19 = arith.constant 0 : i32
    %37 = arith.addi %36, %c0_i32_19 : i32
    %38 = tpu.assume_multiple %37, 8 : i32
    %39 = arith.index_cast %38 : i32 to index
    %c0_20 = arith.constant 0 : index
    %40 = vector.load %arg20[%39, %c0_20] : memref<64x128xf32, #tpu.memory_space<vmem>>, vector<8x128xf32>
    %c0_21 = arith.constant 0 : index
    %c0_22 = arith.constant 0 : index
    %41 = vector.load %arg5[%c0_21, %c0_22] : memref<32x128xf32, #tpu.memory_space<vmem>>, vector<32x128xf32>
    %cst_23 = arith.constant dense<0.000000e+00> : vector<8x128xf32>
    %42 = tpu.matmul %35, %41, %cst_23 {dimension_numbers = #tpu.dot_dimension_numbers<[1], [0], [0], [1], [0, 0, 1, 1], [], []>} : vector<8x32xf32>, vector<32x128xf32>, vector<8x128xf32> -> vector<8x128xf32>
    %43 = arith.addf %40, %42 : vector<8x128xf32>
    %44 = arith.negf %43 : vector<8x128xf32>
    %45 = math.exp %44 : vector<8x128xf32>
    %cst_24 = arith.constant 1.000000e+00 : f32
    %46 = vector.broadcast %cst_24 : f32 to vector<8x128xf32>
    %47 = arith.addf %46, %45 : vector<8x128xf32>
    %48 = arith.divf %46, %47 : vector<8x128xf32>
    %49 = vector.extract_strided_slice %48 {offsets = [0, 0], sizes = [8, 32], strides = [1, 1]} : vector<8x128xf32> to vector<8x32xf32>
    %50 = vector.extract_strided_slice %48 {offsets = [0, 32], sizes = [8, 32], strides = [1, 1]} : vector<8x128xf32> to vector<8x32xf32>
    %51 = vector.extract_strided_slice %48 {offsets = [0, 64], sizes = [8, 32], strides = [1, 1]} : vector<8x128xf32> to vector<8x32xf32>
    %cst_25 = arith.constant 2.000000e+00 : f32
    %52 = vector.broadcast %cst_25 : f32 to vector<8x32xf32>
    %53 = arith.mulf %52, %51 : vector<8x32xf32>
    %cst_26 = arith.constant 1.000000e+00 : f32
    %54 = vector.broadcast %cst_26 : f32 to vector<8x32xf32>
    %55 = arith.subf %53, %54 : vector<8x32xf32>
    %56 = vector.extract_strided_slice %48 {offsets = [0, 96], sizes = [8, 32], strides = [1, 1]} : vector<8x128xf32> to vector<8x32xf32>
    %57 = arith.mulf %50, %33 : vector<8x32xf32>
    %58 = arith.mulf %49, %55 : vector<8x32xf32>
    %59 = arith.addf %57, %58 : vector<8x32xf32>
    %60 = math.tanh %59 : vector<8x32xf32>
    %61 = arith.mulf %56, %60 : vector<8x32xf32>
    %c2_i32 = arith.constant 2 : i32
    %c8_i32_27 = arith.constant 8 : i32
    %62 = arith.muli %c2_i32, %c8_i32_27 : i32
    %c0_i32_28 = arith.constant 0 : i32
    %63 = arith.addi %62, %c0_i32_28 : i32
    %64 = tpu.assume_multiple %63, 8 : i32
    %65 = arith.index_cast %64 : i32 to index
    %c0_29 = arith.constant 0 : index
    %66 = vector.load %arg20[%65, %c0_29] : memref<64x128xf32, #tpu.memory_space<vmem>>, vector<8x128xf32>
    %c0_30 = arith.constant 0 : index
    %c0_31 = arith.constant 0 : index
    %67 = vector.load %arg5[%c0_30, %c0_31] : memref<32x128xf32, #tpu.memory_space<vmem>>, vector<32x128xf32>
    %cst_32 = arith.constant dense<0.000000e+00> : vector<8x128xf32>
    %68 = tpu.matmul %61, %67, %cst_32 {dimension_numbers = #tpu.dot_dimension_numbers<[1], [0], [0], [1], [0, 0, 1, 1], [], []>} : vector<8x32xf32>, vector<32x128xf32>, vector<8x128xf32> -> vector<8x128xf32>
    %69 = arith.addf %66, %68 : vector<8x128xf32>
    %70 = arith.negf %69 : vector<8x128xf32>
    %71 = math.exp %70 : vector<8x128xf32>
    %cst_33 = arith.constant 1.000000e+00 : f32
    %72 = vector.broadcast %cst_33 : f32 to vector<8x128xf32>
    %73 = arith.addf %72, %71 : vector<8x128xf32>
    %74 = arith.divf %72, %73 : vector<8x128xf32>
    %75 = vector.extract_strided_slice %74 {offsets = [0, 0], sizes = [8, 32], strides = [1, 1]} : vector<8x128xf32> to vector<8x32xf32>
    %76 = vector.extract_strided_slice %74 {offsets = [0, 32], sizes = [8, 32], strides = [1, 1]} : vector<8x128xf32> to vector<8x32xf32>
    %77 = vector.extract_strided_slice %74 {offsets = [0, 64], sizes = [8, 32], strides = [1, 1]} : vector<8x128xf32> to vector<8x32xf32>
    %cst_34 = arith.constant 2.000000e+00 : f32
    %78 = vector.broadcast %cst_34 : f32 to vector<8x32xf32>
    %79 = arith.mulf %78, %77 : vector<8x32xf32>
    %cst_35 = arith.constant 1.000000e+00 : f32
    %80 = vector.broadcast %cst_35 : f32 to vector<8x32xf32>
    %81 = arith.subf %79, %80 : vector<8x32xf32>
    %82 = vector.extract_strided_slice %74 {offsets = [0, 96], sizes = [8, 32], strides = [1, 1]} : vector<8x128xf32> to vector<8x32xf32>
    %83 = arith.mulf %76, %59 : vector<8x32xf32>
    %84 = arith.mulf %75, %81 : vector<8x32xf32>
    %85 = arith.addf %83, %84 : vector<8x32xf32>
    %86 = math.tanh %85 : vector<8x32xf32>
    %87 = arith.mulf %82, %86 : vector<8x32xf32>
    %c3_i32 = arith.constant 3 : i32
    %c8_i32_36 = arith.constant 8 : i32
    %88 = arith.muli %c3_i32, %c8_i32_36 : i32
    %c0_i32_37 = arith.constant 0 : i32
    %89 = arith.addi %88, %c0_i32_37 : i32
    %90 = tpu.assume_multiple %89, 8 : i32
    %91 = arith.index_cast %90 : i32 to index
    %c0_38 = arith.constant 0 : index
    %92 = vector.load %arg20[%91, %c0_38] : memref<64x128xf32, #tpu.memory_space<vmem>>, vector<8x128xf32>
    %c0_39 = arith.constant 0 : index
    %c0_40 = arith.constant 0 : index
    %93 = vector.load %arg5[%c0_39, %c0_40] : memref<32x128xf32, #tpu.memory_space<vmem>>, vector<32x128xf32>
    %cst_41 = arith.constant dense<0.000000e+00> : vector<8x128xf32>
    %94 = tpu.matmul %87, %93, %cst_41 {dimension_numbers = #tpu.dot_dimension_numbers<[1], [0], [0], [1], [0, 0, 1, 1], [], []>} : vector<8x32xf32>, vector<32x128xf32>, vector<8x128xf32> -> vector<8x128xf32>
    %95 = arith.addf %92, %94 : vector<8x128xf32>
    %96 = arith.negf %95 : vector<8x128xf32>
    %97 = math.exp %96 : vector<8x128xf32>
    %cst_42 = arith.constant 1.000000e+00 : f32
    %98 = vector.broadcast %cst_42 : f32 to vector<8x128xf32>
    %99 = arith.addf %98, %97 : vector<8x128xf32>
    %100 = arith.divf %98, %99 : vector<8x128xf32>
    %101 = vector.extract_strided_slice %100 {offsets = [0, 0], sizes = [8, 32], strides = [1, 1]} : vector<8x128xf32> to vector<8x32xf32>
    %102 = vector.extract_strided_slice %100 {offsets = [0, 32], sizes = [8, 32], strides = [1, 1]} : vector<8x128xf32> to vector<8x32xf32>
    %103 = vector.extract_strided_slice %100 {offsets = [0, 64], sizes = [8, 32], strides = [1, 1]} : vector<8x128xf32> to vector<8x32xf32>
    %cst_43 = arith.constant 2.000000e+00 : f32
    %104 = vector.broadcast %cst_43 : f32 to vector<8x32xf32>
    %105 = arith.mulf %104, %103 : vector<8x32xf32>
    %cst_44 = arith.constant 1.000000e+00 : f32
    %106 = vector.broadcast %cst_44 : f32 to vector<8x32xf32>
    %107 = arith.subf %105, %106 : vector<8x32xf32>
    %108 = vector.extract_strided_slice %100 {offsets = [0, 96], sizes = [8, 32], strides = [1, 1]} : vector<8x128xf32> to vector<8x32xf32>
    %109 = arith.mulf %102, %85 : vector<8x32xf32>
    %110 = arith.mulf %101, %107 : vector<8x32xf32>
    %111 = arith.addf %109, %110 : vector<8x32xf32>
    %112 = math.tanh %111 : vector<8x32xf32>
    %113 = arith.mulf %108, %112 : vector<8x32xf32>
    %c4_i32 = arith.constant 4 : i32
    %c8_i32_45 = arith.constant 8 : i32
    %114 = arith.muli %c4_i32, %c8_i32_45 : i32
    %c0_i32_46 = arith.constant 0 : i32
    %115 = arith.addi %114, %c0_i32_46 : i32
    %116 = tpu.assume_multiple %115, 8 : i32
    %117 = arith.index_cast %116 : i32 to index
    %c0_47 = arith.constant 0 : index
    %118 = vector.load %arg20[%117, %c0_47] : memref<64x128xf32, #tpu.memory_space<vmem>>, vector<8x128xf32>
    %c0_48 = arith.constant 0 : index
    %c0_49 = arith.constant 0 : index
    %119 = vector.load %arg5[%c0_48, %c0_49] : memref<32x128xf32, #tpu.memory_space<vmem>>, vector<32x128xf32>
    %cst_50 = arith.constant dense<0.000000e+00> : vector<8x128xf32>
    %120 = tpu.matmul %113, %119, %cst_50 {dimension_numbers = #tpu.dot_dimension_numbers<[1], [0], [0], [1], [0, 0, 1, 1], [], []>} : vector<8x32xf32>, vector<32x128xf32>, vector<8x128xf32> -> vector<8x128xf32>
    %121 = arith.addf %118, %120 : vector<8x128xf32>
    %122 = arith.negf %121 : vector<8x128xf32>
    %123 = math.exp %122 : vector<8x128xf32>
    %cst_51 = arith.constant 1.000000e+00 : f32
    %124 = vector.broadcast %cst_51 : f32 to vector<8x128xf32>
    %125 = arith.addf %124, %123 : vector<8x128xf32>
    %126 = arith.divf %124, %125 : vector<8x128xf32>
    %127 = vector.extract_strided_slice %126 {offsets = [0, 0], sizes = [8, 32], strides = [1, 1]} : vector<8x128xf32> to vector<8x32xf32>
    %128 = vector.extract_strided_slice %126 {offsets = [0, 32], sizes = [8, 32], strides = [1, 1]} : vector<8x128xf32> to vector<8x32xf32>
    %129 = vector.extract_strided_slice %126 {offsets = [0, 64], sizes = [8, 32], strides = [1, 1]} : vector<8x128xf32> to vector<8x32xf32>
    %cst_52 = arith.constant 2.000000e+00 : f32
    %130 = vector.broadcast %cst_52 : f32 to vector<8x32xf32>
    %131 = arith.mulf %130, %129 : vector<8x32xf32>
    %cst_53 = arith.constant 1.000000e+00 : f32
    %132 = vector.broadcast %cst_53 : f32 to vector<8x32xf32>
    %133 = arith.subf %131, %132 : vector<8x32xf32>
    %134 = vector.extract_strided_slice %126 {offsets = [0, 96], sizes = [8, 32], strides = [1, 1]} : vector<8x128xf32> to vector<8x32xf32>
    %135 = arith.mulf %128, %111 : vector<8x32xf32>
    %136 = arith.mulf %127, %133 : vector<8x32xf32>
    %137 = arith.addf %135, %136 : vector<8x32xf32>
    %138 = math.tanh %137 : vector<8x32xf32>
    %139 = arith.mulf %134, %138 : vector<8x32xf32>
    %c5_i32 = arith.constant 5 : i32
    %c8_i32_54 = arith.constant 8 : i32
    %140 = arith.muli %c5_i32, %c8_i32_54 : i32
    %c0_i32_55 = arith.constant 0 : i32
    %141 = arith.addi %140, %c0_i32_55 : i32
    %142 = tpu.assume_multiple %141, 8 : i32
    %143 = arith.index_cast %142 : i32 to index
    %c0_56 = arith.constant 0 : index
    %144 = vector.load %arg20[%143, %c0_56] : memref<64x128xf32, #tpu.memory_space<vmem>>, vector<8x128xf32>
    %c0_57 = arith.constant 0 : index
    %c0_58 = arith.constant 0 : index
    %145 = vector.load %arg5[%c0_57, %c0_58] : memref<32x128xf32, #tpu.memory_space<vmem>>, vector<32x128xf32>
    %cst_59 = arith.constant dense<0.000000e+00> : vector<8x128xf32>
    %146 = tpu.matmul %139, %145, %cst_59 {dimension_numbers = #tpu.dot_dimension_numbers<[1], [0], [0], [1], [0, 0, 1, 1], [], []>} : vector<8x32xf32>, vector<32x128xf32>, vector<8x128xf32> -> vector<8x128xf32>
    %147 = arith.addf %144, %146 : vector<8x128xf32>
    %148 = arith.negf %147 : vector<8x128xf32>
    %149 = math.exp %148 : vector<8x128xf32>
    %cst_60 = arith.constant 1.000000e+00 : f32
    %150 = vector.broadcast %cst_60 : f32 to vector<8x128xf32>
    %151 = arith.addf %150, %149 : vector<8x128xf32>
    %152 = arith.divf %150, %151 : vector<8x128xf32>
    %153 = vector.extract_strided_slice %152 {offsets = [0, 0], sizes = [8, 32], strides = [1, 1]} : vector<8x128xf32> to vector<8x32xf32>
    %154 = vector.extract_strided_slice %152 {offsets = [0, 32], sizes = [8, 32], strides = [1, 1]} : vector<8x128xf32> to vector<8x32xf32>
    %155 = vector.extract_strided_slice %152 {offsets = [0, 64], sizes = [8, 32], strides = [1, 1]} : vector<8x128xf32> to vector<8x32xf32>
    %cst_61 = arith.constant 2.000000e+00 : f32
    %156 = vector.broadcast %cst_61 : f32 to vector<8x32xf32>
    %157 = arith.mulf %156, %155 : vector<8x32xf32>
    %cst_62 = arith.constant 1.000000e+00 : f32
    %158 = vector.broadcast %cst_62 : f32 to vector<8x32xf32>
    %159 = arith.subf %157, %158 : vector<8x32xf32>
    %160 = vector.extract_strided_slice %152 {offsets = [0, 96], sizes = [8, 32], strides = [1, 1]} : vector<8x128xf32> to vector<8x32xf32>
    %161 = arith.mulf %154, %137 : vector<8x32xf32>
    %162 = arith.mulf %153, %159 : vector<8x32xf32>
    %163 = arith.addf %161, %162 : vector<8x32xf32>
    %164 = math.tanh %163 : vector<8x32xf32>
    %165 = arith.mulf %160, %164 : vector<8x32xf32>
    %c6_i32 = arith.constant 6 : i32
    %c8_i32_63 = arith.constant 8 : i32
    %166 = arith.muli %c6_i32, %c8_i32_63 : i32
    %c0_i32_64 = arith.constant 0 : i32
    %167 = arith.addi %166, %c0_i32_64 : i32
    %168 = tpu.assume_multiple %167, 8 : i32
    %169 = arith.index_cast %168 : i32 to index
    %c0_65 = arith.constant 0 : index
    %170 = vector.load %arg20[%169, %c0_65] : memref<64x128xf32, #tpu.memory_space<vmem>>, vector<8x128xf32>
    %c0_66 = arith.constant 0 : index
    %c0_67 = arith.constant 0 : index
    %171 = vector.load %arg5[%c0_66, %c0_67] : memref<32x128xf32, #tpu.memory_space<vmem>>, vector<32x128xf32>
    %cst_68 = arith.constant dense<0.000000e+00> : vector<8x128xf32>
    %172 = tpu.matmul %165, %171, %cst_68 {dimension_numbers = #tpu.dot_dimension_numbers<[1], [0], [0], [1], [0, 0, 1, 1], [], []>} : vector<8x32xf32>, vector<32x128xf32>, vector<8x128xf32> -> vector<8x128xf32>
    %173 = arith.addf %170, %172 : vector<8x128xf32>
    %174 = arith.negf %173 : vector<8x128xf32>
    %175 = math.exp %174 : vector<8x128xf32>
    %cst_69 = arith.constant 1.000000e+00 : f32
    %176 = vector.broadcast %cst_69 : f32 to vector<8x128xf32>
    %177 = arith.addf %176, %175 : vector<8x128xf32>
    %178 = arith.divf %176, %177 : vector<8x128xf32>
    %179 = vector.extract_strided_slice %178 {offsets = [0, 0], sizes = [8, 32], strides = [1, 1]} : vector<8x128xf32> to vector<8x32xf32>
    %180 = vector.extract_strided_slice %178 {offsets = [0, 32], sizes = [8, 32], strides = [1, 1]} : vector<8x128xf32> to vector<8x32xf32>
    %181 = vector.extract_strided_slice %178 {offsets = [0, 64], sizes = [8, 32], strides = [1, 1]} : vector<8x128xf32> to vector<8x32xf32>
    %cst_70 = arith.constant 2.000000e+00 : f32
    %182 = vector.broadcast %cst_70 : f32 to vector<8x32xf32>
    %183 = arith.mulf %182, %181 : vector<8x32xf32>
    %cst_71 = arith.constant 1.000000e+00 : f32
    %184 = vector.broadcast %cst_71 : f32 to vector<8x32xf32>
    %185 = arith.subf %183, %184 : vector<8x32xf32>
    %186 = vector.extract_strided_slice %178 {offsets = [0, 96], sizes = [8, 32], strides = [1, 1]} : vector<8x128xf32> to vector<8x32xf32>
    %187 = arith.mulf %180, %163 : vector<8x32xf32>
    %188 = arith.mulf %179, %185 : vector<8x32xf32>
    %189 = arith.addf %187, %188 : vector<8x32xf32>
    %190 = math.tanh %189 : vector<8x32xf32>
    %191 = arith.mulf %186, %190 : vector<8x32xf32>
    %c7_i32 = arith.constant 7 : i32
    %c8_i32_72 = arith.constant 8 : i32
    %192 = arith.muli %c7_i32, %c8_i32_72 : i32
    %c0_i32_73 = arith.constant 0 : i32
    %193 = arith.addi %192, %c0_i32_73 : i32
    %194 = tpu.assume_multiple %193, 8 : i32
    %195 = arith.index_cast %194 : i32 to index
    %c0_74 = arith.constant 0 : index
    %196 = vector.load %arg20[%195, %c0_74] : memref<64x128xf32, #tpu.memory_space<vmem>>, vector<8x128xf32>
    %c0_75 = arith.constant 0 : index
    %c0_76 = arith.constant 0 : index
    %197 = vector.load %arg5[%c0_75, %c0_76] : memref<32x128xf32, #tpu.memory_space<vmem>>, vector<32x128xf32>
    %cst_77 = arith.constant dense<0.000000e+00> : vector<8x128xf32>
    %198 = tpu.matmul %191, %197, %cst_77 {dimension_numbers = #tpu.dot_dimension_numbers<[1], [0], [0], [1], [0, 0, 1, 1], [], []>} : vector<8x32xf32>, vector<32x128xf32>, vector<8x128xf32> -> vector<8x128xf32>
    %199 = arith.addf %196, %198 : vector<8x128xf32>
    %200 = arith.negf %199 : vector<8x128xf32>
    %201 = math.exp %200 : vector<8x128xf32>
    %cst_78 = arith.constant 1.000000e+00 : f32
    %202 = vector.broadcast %cst_78 : f32 to vector<8x128xf32>
    %203 = arith.addf %202, %201 : vector<8x128xf32>
    %204 = arith.divf %202, %203 : vector<8x128xf32>
    %205 = vector.extract_strided_slice %204 {offsets = [0, 0], sizes = [8, 32], strides = [1, 1]} : vector<8x128xf32> to vector<8x32xf32>
    %206 = vector.extract_strided_slice %204 {offsets = [0, 32], sizes = [8, 32], strides = [1, 1]} : vector<8x128xf32> to vector<8x32xf32>
    %207 = vector.extract_strided_slice %204 {offsets = [0, 64], sizes = [8, 32], strides = [1, 1]} : vector<8x128xf32> to vector<8x32xf32>
    %cst_79 = arith.constant 2.000000e+00 : f32
    %208 = vector.broadcast %cst_79 : f32 to vector<8x32xf32>
    %209 = arith.mulf %208, %207 : vector<8x32xf32>
    %cst_80 = arith.constant 1.000000e+00 : f32
    %210 = vector.broadcast %cst_80 : f32 to vector<8x32xf32>
    %211 = arith.subf %209, %210 : vector<8x32xf32>
    %212 = vector.extract_strided_slice %204 {offsets = [0, 96], sizes = [8, 32], strides = [1, 1]} : vector<8x128xf32> to vector<8x32xf32>
    %213 = arith.mulf %206, %189 : vector<8x32xf32>
    %214 = arith.mulf %205, %211 : vector<8x32xf32>
    %215 = arith.addf %213, %214 : vector<8x32xf32>
    %216 = math.tanh %215 : vector<8x32xf32>
    %217 = arith.mulf %212, %216 : vector<8x32xf32>
    %c8_i32_81 = arith.constant 8 : i32
    %c0_82 = arith.constant 0 : index
    %c0_83 = arith.constant 0 : index
    %218 = vector.load %arg2[%c0_82, %c0_83] : memref<8x32xf32, #tpu.memory_space<vmem>>, vector<8x32xf32>
    %c0_84 = arith.constant 0 : index
    %c0_85 = arith.constant 0 : index
    %219 = vector.load %arg6[%c0_84, %c0_85] : memref<32x32xf32, #tpu.memory_space<vmem>>, vector<32x32xf32>
    %cst_86 = arith.constant dense<0.000000e+00> : vector<8x32xf32>
    %220 = tpu.matmul %218, %219, %cst_86 {dimension_numbers = #tpu.dot_dimension_numbers<[1], [0], [0], [1], [0, 0, 1, 1], [], []>} : vector<8x32xf32>, vector<32x32xf32>, vector<8x32xf32> -> vector<8x32xf32>
    %c0_87 = arith.constant 0 : index
    %c0_88 = arith.constant 0 : index
    %221 = vector.load %arg7[%c0_87, %c0_88] : memref<1x32xf32, #tpu.memory_space<vmem>>, vector<1x32xf32>
    %222 = vector.broadcast %221 : vector<1x32xf32> to vector<8x32xf32>
    %223 = arith.addf %220, %222 : vector<8x32xf32>
    %cst_89 = arith.constant 0.000000e+00 : f32
    %224 = vector.broadcast %cst_89 : f32 to vector<8x32xf32>
    %225 = arith.maximumf %223, %224 : vector<8x32xf32>
    %c0_90 = arith.constant 0 : index
    %c0_91 = arith.constant 0 : index
    %226 = vector.load %arg8[%c0_90, %c0_91] : memref<32x32xf32, #tpu.memory_space<vmem>>, vector<32x32xf32>
    %cst_92 = arith.constant dense<0.000000e+00> : vector<8x32xf32>
    %227 = tpu.matmul %225, %226, %cst_92 {dimension_numbers = #tpu.dot_dimension_numbers<[1], [0], [0], [1], [0, 0, 1, 1], [], []>} : vector<8x32xf32>, vector<32x32xf32>, vector<8x32xf32> -> vector<8x32xf32>
    %c0_93 = arith.constant 0 : index
    %c0_94 = arith.constant 0 : index
    %228 = vector.load %arg9[%c0_93, %c0_94] : memref<1x32xf32, #tpu.memory_space<vmem>>, vector<1x32xf32>
    %229 = vector.broadcast %228 : vector<1x32xf32> to vector<8x32xf32>
    %230 = arith.addf %227, %229 : vector<8x32xf32>
    %cst_95 = arith.constant 0.000000e+00 : f32
    %231 = vector.broadcast %cst_95 : f32 to vector<8x32xf32>
    %232 = arith.maximumf %230, %231 : vector<8x32xf32>
    %c0_96 = arith.constant 0 : index
    %c0_97 = arith.constant 0 : index
    %233 = vector.load %arg10[%c0_96, %c0_97] : memref<32x32xf32, #tpu.memory_space<vmem>>, vector<32x32xf32>
    %cst_98 = arith.constant dense<0.000000e+00> : vector<8x32xf32>
    %234 = tpu.matmul %232, %233, %cst_98 {dimension_numbers = #tpu.dot_dimension_numbers<[1], [0], [0], [1], [0, 0, 1, 1], [], []>} : vector<8x32xf32>, vector<32x32xf32>, vector<8x32xf32> -> vector<8x32xf32>
    %c0_99 = arith.constant 0 : index
    %c0_100 = arith.constant 0 : index
    %235 = vector.load %arg11[%c0_99, %c0_100] : memref<1x32xf32, #tpu.memory_space<vmem>>, vector<1x32xf32>
    %236 = vector.broadcast %235 : vector<1x32xf32> to vector<8x32xf32>
    %237 = arith.addf %234, %236 : vector<8x32xf32>
    %cst_101 = arith.constant 0.000000e+00 : f32
    %238 = vector.broadcast %cst_101 : f32 to vector<8x32xf32>
    %239 = arith.maximumf %237, %238 : vector<8x32xf32>
    %c0_102 = arith.constant 0 : index
    %c0_103 = arith.constant 0 : index
    %240 = vector.load %arg12[%c0_102, %c0_103] : memref<32x32xf32, #tpu.memory_space<vmem>>, vector<32x32xf32>
    %cst_104 = arith.constant dense<0.000000e+00> : vector<8x32xf32>
    %241 = tpu.matmul %217, %240, %cst_104 {dimension_numbers = #tpu.dot_dimension_numbers<[1], [0], [0], [1], [0, 0, 1, 1], [], []>} : vector<8x32xf32>, vector<32x32xf32>, vector<8x32xf32> -> vector<8x32xf32>
    %c0_105 = arith.constant 0 : index
    %c0_106 = arith.constant 0 : index
    %242 = vector.load %arg13[%c0_105, %c0_106] : memref<32x32xf32, #tpu.memory_space<vmem>>, vector<32x32xf32>
    %cst_107 = arith.constant dense<0.000000e+00> : vector<8x32xf32>
    %243 = tpu.matmul %239, %242, %cst_107 {dimension_numbers = #tpu.dot_dimension_numbers<[1], [0], [0], [1], [0, 0, 1, 1], [], []>} : vector<8x32xf32>, vector<32x32xf32>, vector<8x32xf32> -> vector<8x32xf32>
    %244 = arith.addf %241, %243 : vector<8x32xf32>
    %c0_108 = arith.constant 0 : index
    %c0_109 = arith.constant 0 : index
    %245 = vector.load %arg14[%c0_108, %c0_109] : memref<1x32xf32, #tpu.memory_space<vmem>>, vector<1x32xf32>
    %246 = vector.broadcast %245 : vector<1x32xf32> to vector<8x32xf32>
    %247 = arith.addf %244, %246 : vector<8x32xf32>
    %cst_110 = arith.constant 0.000000e+00 : f32
    %248 = vector.broadcast %cst_110 : f32 to vector<8x32xf32>
    %249 = arith.maximumf %247, %248 : vector<8x32xf32>
    %c0_111 = arith.constant 0 : index
    %c0_112 = arith.constant 0 : index
    %250 = vector.load %arg15[%c0_111, %c0_112] : memref<32x32xf32, #tpu.memory_space<vmem>>, vector<32x32xf32>
    %cst_113 = arith.constant dense<0.000000e+00> : vector<8x32xf32>
    %251 = tpu.matmul %249, %250, %cst_113 {dimension_numbers = #tpu.dot_dimension_numbers<[1], [0], [0], [1], [0, 0, 1, 1], [], []>} : vector<8x32xf32>, vector<32x32xf32>, vector<8x32xf32> -> vector<8x32xf32>
    %c0_114 = arith.constant 0 : index
    %c0_115 = arith.constant 0 : index
    %252 = vector.load %arg16[%c0_114, %c0_115] : memref<1x32xf32, #tpu.memory_space<vmem>>, vector<1x32xf32>
    %253 = vector.broadcast %252 : vector<1x32xf32> to vector<8x32xf32>
    %254 = arith.addf %251, %253 : vector<8x32xf32>
    %cst_116 = arith.constant 0.000000e+00 : f32
    %255 = vector.broadcast %cst_116 : f32 to vector<8x32xf32>
    %256 = arith.maximumf %254, %255 : vector<8x32xf32>
    %c0_117 = arith.constant 0 : index
    %c0_118 = arith.constant 0 : index
    %257 = vector.load %arg17[%c0_117, %c0_118] : memref<32x1xf32, #tpu.memory_space<vmem>>, vector<32x1xf32>
    %cst_119 = arith.constant dense<0.000000e+00> : vector<8x1xf32>
    %258 = tpu.matmul %256, %257, %cst_119 {dimension_numbers = #tpu.dot_dimension_numbers<[1], [0], [0], [1], [0, 0, 1, 1], [], []>} : vector<8x32xf32>, vector<32x1xf32>, vector<8x1xf32> -> vector<8x1xf32>
    %c0_120 = arith.constant 0 : index
    %c0_121 = arith.constant 0 : index
    %259 = vector.load %arg18[%c0_120, %c0_121] : memref<1x1xf32, #tpu.memory_space<vmem>>, vector<1x1xf32>
    %260 = vector.broadcast %259 : vector<1x1xf32> to vector<8x1xf32>
    %261 = arith.addf %258, %260 : vector<8x1xf32>
    %262 = math.tanh %261 : vector<8x1xf32>
    %c0_122 = arith.constant 0 : index
    %c0_123 = arith.constant 0 : index
    %263 = vector.load %arg19[%c0_122, %c0_123] : memref<8x1xf32, #tpu.memory_space<vmem>>, vector<8x1xf32>
    tpu.vector_store %arg19[%c0_122, %c0_123], %262 {strides = array<i32>} : memref<8x1xf32, #tpu.memory_space<vmem>>, vector<8x1xf32>,
    return
  }
  func.func @transform_0(%arg0: i32) -> (i32, i32, i32) {
    %c0_i32 = arith.constant 0 : i32
    %c0_i32_0 = arith.constant 0 : i32
    %c0_i32_1 = arith.constant 0 : i32
    return %c0_i32, %arg0, %c0_i32_0 : i32, i32, i32
  }
  func.func @transform_1(%arg0: i32) -> (i32, i32) {
    %c0_i32 = arith.constant 0 : i32
    %c0_i32_0 = arith.constant 0 : i32
    return %arg0, %c0_i32 : i32, i32
  }
  func.func @transform_2(%arg0: i32) -> (i32, i32) {
    %c0_i32 = arith.constant 0 : i32
    %c0_i32_0 = arith.constant 0 : i32
    %c0_i32_1 = arith.constant 0 : i32
    return %c0_i32, %c0_i32_0 : i32, i32
  }
  func.func @transform_3(%arg0: i32) -> (i32, i32) {
    %c0_i32 = arith.constant 0 : i32
    %c0_i32_0 = arith.constant 0 : i32
    %c0_i32_1 = arith.constant 0 : i32
    return %c0_i32, %c0_i32_0 : i32, i32
  }
  func.func @transform_4(%arg0: i32) -> (i32, i32) {
    %c0_i32 = arith.constant 0 : i32
    %c0_i32_0 = arith.constant 0 : i32
    %c0_i32_1 = arith.constant 0 : i32
    return %c0_i32, %c0_i32_0 : i32, i32
  }
  func.func @transform_5(%arg0: i32) -> (i32, i32) {
    %c0_i32 = arith.constant 0 : i32
    %c0_i32_0 = arith.constant 0 : i32
    %c0_i32_1 = arith.constant 0 : i32
    return %c0_i32, %c0_i32_0 : i32, i32
  }
  func.func @transform_6(%arg0: i32) -> (i32, i32) {
    %c0_i32 = arith.constant 0 : i32
    %c0_i32_0 = arith.constant 0 : i32
    %c0_i32_1 = arith.constant 0 : i32
    return %c0_i32, %c0_i32_0 : i32, i32
  }
  func.func @transform_7(%arg0: i32) -> (i32, i32) {
    %c0_i32 = arith.constant 0 : i32
    %c0_i32_0 = arith.constant 0 : i32
    %c0_i32_1 = arith.constant 0 : i32
    return %c0_i32, %c0_i32_0 : i32, i32
  }
  func.func @transform_8(%arg0: i32) -> (i32, i32) {
    %c0_i32 = arith.constant 0 : i32
    %c0_i32_0 = arith.constant 0 : i32
    %c0_i32_1 = arith.constant 0 : i32
    return %c0_i32, %c0_i32_0 : i32, i32
  }
  func.func @transform_9(%arg0: i32) -> (i32, i32) {
    %c0_i32 = arith.constant 0 : i32
    %c0_i32_0 = arith.constant 0 : i32
    %c0_i32_1 = arith.constant 0 : i32
    return %c0_i32, %c0_i32_0 : i32, i32
  }
  func.func @transform_10(%arg0: i32) -> (i32, i32) {
    %c0_i32 = arith.constant 0 : i32
    %c0_i32_0 = arith.constant 0 : i32
    %c0_i32_1 = arith.constant 0 : i32
    return %c0_i32, %c0_i32_0 : i32, i32
  }
  func.func @transform_11(%arg0: i32) -> (i32, i32) {
    %c0_i32 = arith.constant 0 : i32
    %c0_i32_0 = arith.constant 0 : i32
    %c0_i32_1 = arith.constant 0 : i32
    return %c0_i32, %c0_i32_0 : i32, i32
  }
  func.func @transform_12(%arg0: i32) -> (i32, i32) {
    %c0_i32 = arith.constant 0 : i32
    %c0_i32_0 = arith.constant 0 : i32
    %c0_i32_1 = arith.constant 0 : i32
    return %c0_i32, %c0_i32_0 : i32, i32
  }
  func.func @transform_13(%arg0: i32) -> (i32, i32) {
    %c0_i32 = arith.constant 0 : i32
    %c0_i32_0 = arith.constant 0 : i32
    %c0_i32_1 = arith.constant 0 : i32
    return %c0_i32, %c0_i32_0 : i32, i32
  }
  func.func @transform_14(%arg0: i32) -> (i32, i32) {
    %c0_i32 = arith.constant 0 : i32
    %c0_i32_0 = arith.constant 0 : i32
    %c0_i32_1 = arith.constant 0 : i32
    return %c0_i32, %c0_i32_0 : i32, i32
  }
  func.func @transform_15(%arg0: i32) -> (i32, i32) {
    %c0_i32 = arith.constant 0 : i32
    %c0_i32_0 = arith.constant 0 : i32
    %c0_i32_1 = arith.constant 0 : i32
    return %c0_i32, %c0_i32_0 : i32, i32
  }
  func.func @transform_16(%arg0: i32) -> (i32, i32) {
    %c0_i32 = arith.constant 0 : i32
    %c0_i32_0 = arith.constant 0 : i32
    %c0_i32_1 = arith.constant 0 : i32
    return %c0_i32, %c0_i32_0 : i32, i32
  }
  func.func @transform_17(%arg0: i32) -> (i32, i32) {
    %c0_i32 = arith.constant 0 : i32
    %c0_i32_0 = arith.constant 0 : i32
    %c0_i32_1 = arith.constant 0 : i32
    return %c0_i32, %c0_i32_0 : i32, i32
  }
  func.func @transform_18(%arg0: i32) -> (i32, i32) {
    %c0_i32 = arith.constant 0 : i32
    %c0_i32_0 = arith.constant 0 : i32
    return %arg0, %c0_i32 : i32, i32
  }
}

</mosaic_0001>

<llo_original>
// kernel: tpu_custom_call.1
$region0: #{tpu_custom_call.1}
  #allocation0 [shape = 'u32[]', space=smem, size = 0x4, offset = 0x4, fixed_abs, tag = 'smem constant byte address 0x4 - core index']
  #allocation1 [shape = 'u32[144,128]{1,0:T(1,128)}', space=vmem, size = 0x12000, scoped, tag = 'internal scratch']
  #allocation2 [shape = 'f32[64,128]{1,0:T(8,128)}', space=vmem, size = 0x8000, scoped, tag = 'scratch operand']
  #allocation3 [shape = 'f32[1,1]{1,0:T(1,128)S(1)}', space=vmem, size = 0x200, scoped, tag = 'scoped memory for tpu_custom_call.1']
  %s0 = inlined_call_operand.vmem [shape: f32[8,8,6], index: 0, kind: input, shape index: {}]
  %s1 = inlined_call_operand.hbm [shape: f32[8,32], index: 1, kind: input, shape index: {}]
  %s2 = inlined_call_operand.hbm [shape: f32[6,128], index: 2, kind: input, shape index: {}]
  %s3 = inlined_call_operand.hbm [shape: f32[1,128], index: 3, kind: input, shape index: {}]
  %s4 = inlined_call_operand.vmem [shape: f32[32,128], index: 4, kind: input, shape index: {}]
  %s5 = inlined_call_operand.vmem [shape: f32[32,32], index: 5, kind: input, shape index: {}]
  %s6 = inlined_call_operand.vmem [shape: f32[1,32], index: 6, kind: input, shape index: {}]
  %s7 = inlined_call_operand.vmem [shape: f32[32,32], index: 7, kind: input, shape index: {}]
  %s8 = inlined_call_operand.vmem [shape: f32[1,32], index: 8, kind: input, shape index: {}]
  %s9 = inlined_call_operand.vmem [shape: f32[32,32], index: 9, kind: input, shape index: {}]
  %s10 = inlined_call_operand.hbm [shape: f32[1,32], index: 10, kind: input, shape index: {}]
  %s11 = inlined_call_operand.vmem [shape: f32[32,32], index: 11, kind: input, shape index: {}]
  %s12 = inlined_call_operand.vmem [shape: f32[32,32], index: 12, kind: input, shape index: {}]
  %s13 = inlined_call_operand.vmem [shape: f32[1,32], index: 13, kind: input, shape index: {}]
  %s14 = inlined_call_operand.hbm [shape: f32[32,32], index: 14, kind: input, shape index: {}]
  %s15 = inlined_call_operand.vmem [shape: f32[1,32], index: 15, kind: input, shape index: {}]
  %s16 = inlined_call_operand.vmem [shape: f32[32,1], index: 16, kind: input, shape index: {}]
  %s17 = inlined_call_operand.<no memory space> [shape: f32[1,1], index: 17, kind: input, shape index: {}]
  %s18 = inlined_call_operand.vmem [shape: f32[8,1], index: 18, kind: output, shape index: {}]
  %s19 = sld [smem:[#allocation0]]
  $region102: #{tpu_custom_call.1} parent=0
    _
  %s21 = ssub.s32 1, %s19
  %s22 = scalar_select 0, %s21, %s19
  %v23 = vstv %s17
  %24 = vst [vmem:[#allocation3] sm:$0x1] %v23
  $region1: #{tpu_custom_call.1} parent=0
    #allocation4 [shape = 'u8[4096]{0}', space=vmem, size = 0x1000, scoped, tag = 'input window, operand 1, single buffered']
    #allocation5 [shape = 's32[1]{0}', space=sflag, size = 0x4, scoped, tag = 'scoped memory for tpu_custom_call.1']
    #allocation6 [shape = 'u8[4096]{0}', space=vmem, size = 0x1000, scoped, tag = 'input window, operand 2, single buffered']
    #allocation7 [shape = 's32[1]{0}', space=sflag, size = 0x4, scoped, tag = 'scoped memory for tpu_custom_call.1']
    #allocation8 [shape = 'u8[512]{0}', space=vmem, size = 0x400, scoped, tag = 'input window, operand 3, single buffered']
    #allocation9 [shape = 'u8[512]{0}', space=vmem, size = 0x400, scoped, tag = 'input window, operand 10, single buffered']
    #allocation10 [shape = 's32[1]{0}', space=sflag, size = 0x4, scoped, tag = 'scoped memory for tpu_custom_call.1']
    #allocation11 [shape = 'u8[16384]{0}', space=vmem, size = 0x4000, scoped, tag = 'input window, operand 14, single buffered']
    %25 = vsyncpa [#allocation5], 0
    %26 = vsyncpa [#allocation7], 0
    %27 = vsyncpa [#allocation10], 0
    // Predicated region
    $region2: #{tpu_custom_call.1} parent=1 // pred_check
      _
    $region3: #{tpu_custom_call.1} parent=1 // pred_check_branch
      %29 = sbr.rel (0) target = $region5
    $region4: #{tpu_custom_call.1} parent=1 // pred_region
      _
    $region5: #{tpu_custom_call.1} parent=1 // pred_fallthru
      _
    // Predicated region
    $region6: #{tpu_custom_call.1} parent=1 // pred_check
      _
    $region7: #{tpu_custom_call.1} parent=1 // pred_check_branch
      %31 = sbr.rel (0) target = $region9
    $region8: #{tpu_custom_call.1} parent=1 // pred_region
      %s33 = ssub.s32 128, 128
      %34 = vsyncadd [#allocation5], %s33
      %s36 = sshll.u32 [#allocation4], 4
      %s37 = int_to_ptr.vmem [resolvable:$true] %s36
      %39 = dma.hbm_to_vmem [thread:$0]  %s1, 128, %s37, [#allocation5]
    $region9: #{tpu_custom_call.1} parent=1 // pred_fallthru
      _
    // Predicated region
    $region10: #{tpu_custom_call.1} parent=1 // pred_check
      _
    $region11: #{tpu_custom_call.1} parent=1 // pred_check_branch
      %41 = sbr.rel (0) target = $region13
    $region12: #{tpu_custom_call.1} parent=1 // pred_region
      %s43 = ssub.s32 128, 128
      %44 = vsyncadd [#allocation7], %s43
      %s46 = sshll.u32 [#allocation6], 4
      %s47 = int_to_ptr.vmem [resolvable:$true] %s46
      %49 = dma.hbm_to_vmem [thread:$0]  %s2, 128, %s47, [#allocation7]
    $region13: #{tpu_custom_call.1} parent=1 // pred_fallthru
      _
    // Predicated region
    $region14: #{tpu_custom_call.1} parent=1 // pred_check
      _
    $region15: #{tpu_custom_call.1} parent=1 // pred_check_branch
      %51 = sbr.rel (0) target = $region17
    $region16: #{tpu_custom_call.1} parent=1 // pred_region
      %s53 = ssub.s32 16, 16
      %54 = vsyncadd [#allocation7], %s53
      %s56 = sshll.u32 [#allocation8], 4
      %s57 = int_to_ptr.vmem [resolvable:$true] %s56
      %59 = dma.hbm_to_vmem [thread:$0]  %s3, 16, %s57, [#allocation7]
    $region17: #{tpu_custom_call.1} parent=1 // pred_fallthru
      _
    // Predicated region
    $region18: #{tpu_custom_call.1} parent=1 // pred_check
      _
    $region19: #{tpu_custom_call.1} parent=1 // pred_check_branch
      %61 = sbr.rel (0) target = $region21
    $region20: #{tpu_custom_call.1} parent=1 // pred_region
      _
    $region21: #{tpu_custom_call.1} parent=1 // pred_fallthru
      _
    // Predicated region
    $region22: #{tpu_custom_call.1} parent=1 // pred_check
      _
    $region23: #{tpu_custom_call.1} parent=1 // pred_check_branch
      %63 = sbr.rel (0) target = $region25
    $region24: #{tpu_custom_call.1} parent=1 // pred_region
      _
    $region25: #{tpu_custom_call.1} parent=1 // pred_fallthru
      _
    // Predicated region
    $region26: #{tpu_custom_call.1} parent=1 // pred_check
      _
    $region27: #{tpu_custom_call.1} parent=1 // pred_check_branch
      %65 = sbr.rel (0) target = $region29
    $region28: #{tpu_custom_call.1} parent=1 // pred_region
      _
    $region29: #{tpu_custom_call.1} parent=1 // pred_fallthru
      _
    // Predicated region
    $region30: #{tpu_custom_call.1} parent=1 // pred_check
      _
    $region31: #{tpu_custom_call.1} parent=1 // pred_check_branch
      %67 = sbr.rel (0) target = $region33
    $region32: #{tpu_custom_call.1} parent=1 // pred_region
      _
    $region33: #{tpu_custom_call.1} parent=1 // pred_fallthru
      _
    // Predicated region
    $region34: #{tpu_custom_call.1} parent=1 // pred_check
      _
    $region35: #{tpu_custom_call.1} parent=1 // pred_check_branch
      %69 = sbr.rel (0) target = $region37
    $region36: #{tpu_custom_call.1} parent=1 // pred_region
      _
    $region37: #{tpu_custom_call.1} parent=1 // pred_fallthru
      _
    // Predicated region
    $region38: #{tpu_custom_call.1} parent=1 // pred_check
      _
    $region39: #{tpu_custom_call.1} parent=1 // pred_check_branch
      %71 = sbr.rel (0) target = $region41
    $region40: #{tpu_custom_call.1} parent=1 // pred_region
      _
    $region41: #{tpu_custom_call.1} parent=1 // pred_fallthru
      _
    // Predicated region
    $region42: #{tpu_custom_call.1} parent=1 // pred_check
      _
    $region43: #{tpu_custom_call.1} parent=1 // pred_check_branch
      %73 = sbr.rel (0) target = $region45
    $region44: #{tpu_custom_call.1} parent=1 // pred_region
      %s75 = ssub.s32 16, 16
      %76 = vsyncadd [#allocation10], %s75
      %s78 = sshll.u32 [#allocation9], 4
      %s79 = int_to_ptr.vmem [resolvable:$true] %s78
      %81 = dma.hbm_to_vmem [thread:$0]  %s10, 16, %s79, [#allocation10]
    $region45: #{tpu_custom_call.1} parent=1 // pred_fallthru
      _
    // Predicated region
    $region46: #{tpu_custom_call.1} parent=1 // pred_check
      _
    $region47: #{tpu_custom_call.1} parent=1 // pred_check_branch
      %83 = sbr.rel (0) target = $region49
    $region48: #{tpu_custom_call.1} parent=1 // pred_region
      _
    $region49: #{tpu_custom_call.1} parent=1 // pred_fallthru
      _
    // Predicated region
    $region50: #{tpu_custom_call.1} parent=1 // pred_check
      _
    $region51: #{tpu_custom_call.1} parent=1 // pred_check_branch
      %85 = sbr.rel (0) target = $region53
    $region52: #{tpu_custom_call.1} parent=1 // pred_region
      _
    $region53: #{tpu_custom_call.1} parent=1 // pred_fallthru
      _
    // Predicated region
    $region54: #{tpu_custom_call.1} parent=1 // pred_check
      _
    $region55: #{tpu_custom_call.1} parent=1 // pred_check_branch
      %87 = sbr.rel (0) target = $region57
    $region56: #{tpu_custom_call.1} parent=1 // pred_region
      _
    $region57: #{tpu_custom_call.1} parent=1 // pred_fallthru
      _
    // Predicated region
    $region58: #{tpu_custom_call.1} parent=1 // pred_check
      _
    $region59: #{tpu_custom_call.1} parent=1 // pred_check_branch
      %89 = sbr.rel (0) target = $region61
    $region60: #{tpu_custom_call.1} parent=1 // pred_region
      %s91 = ssub.s32 512, 512
      %92 = vsyncadd [#allocation10], %s91
      %s93 = sshll.u32 [#allocation11], 4
      %s94 = int_to_ptr.vmem [resolvable:$true] %s93
      %99 = dma.hbm_to_vmem [thread:$0]  %s14, 512, %s94, [#allocation10], 128, 128, 8
    $region61: #{tpu_custom_call.1} parent=1 // pred_fallthru
      _
    // Predicated region
    $region62: #{tpu_custom_call.1} parent=1 // pred_check
      _
    $region63: #{tpu_custom_call.1} parent=1 // pred_check_branch
      %101 = sbr.rel (0) target = $region65
    $region64: #{tpu_custom_call.1} parent=1 // pred_region
      _
    $region65: #{tpu_custom_call.1} parent=1 // pred_fallthru
      _
    // Predicated region
    $region66: #{tpu_custom_call.1} parent=1 // pred_check
      _
    $region67: #{tpu_custom_call.1} parent=1 // pred_check_branch
      %103 = sbr.rel (0) target = $region69
    $region68: #{tpu_custom_call.1} parent=1 // pred_region
      _
    $region69: #{tpu_custom_call.1} parent=1 // pred_fallthru
      _
    // Predicated region
    $region70: #{tpu_custom_call.1} parent=1 // pred_check
      _
    $region71: #{tpu_custom_call.1} parent=1 // pred_check_branch
      %105 = sbr.rel (0) target = $region73
    $region72: #{tpu_custom_call.1} parent=1 // pred_region
      _
    $region73: #{tpu_custom_call.1} parent=1 // pred_fallthru
      _
    // Predicated region
    $region74: #{tpu_custom_call.1} parent=1 // pred_check
      _
    $region75: #{tpu_custom_call.1} parent=1 // pred_check_branch
      %107 = sbr.rel (0) target = $region77
    $region76: #{tpu_custom_call.1} parent=1 // pred_region
      %108 = dma.done [#allocation5], 128
    $region77: #{tpu_custom_call.1} parent=1 // pred_fallthru
      _
    // Predicated region
    $region78: #{tpu_custom_call.1} parent=1 // pred_check
      _
    $region79: #{tpu_custom_call.1} parent=1 // pred_check_branch
      %110 = sbr.rel (0) target = $region81
    $region80: #{tpu_custom_call.1} parent=1 // pred_region
      %111 = dma.done [#allocation7], 128
    $region81: #{tpu_custom_call.1} parent=1 // pred_fallthru
      _
    // Predicated region
    $region82: #{tpu_custom_call.1} parent=1 // pred_check
      _
    $region83: #{tpu_custom_call.1} parent=1 // pred_check_branch
      %113 = sbr.rel (0) target = $region85
    $region84: #{tpu_custom_call.1} parent=1 // pred_region
      %114 = dma.done [#allocation7], 16
    $region85: #{tpu_custom_call.1} parent=1 // pred_fallthru
      _
    // Predicated region
    $region86: #{tpu_custom_call.1} parent=1 // pred_check
      _
    $region87: #{tpu_custom_call.1} parent=1 // pred_check_branch
      %116 = sbr.rel (0) target = $region89
    $region88: #{tpu_custom_call.1} parent=1 // pred_region
      %117 = dma.done [#allocation10], 16
    $region89: #{tpu_custom_call.1} parent=1 // pred_fallthru
      _
    // Predicated region
    $region90: #{tpu_custom_call.1} parent=1 // pred_check
      _
    $region91: #{tpu_custom_call.1} parent=1 // pred_check_branch
      %119 = sbr.rel (0) target = $region93
    $region92: #{tpu_custom_call.1} parent=1 // pred_region
      %120 = dma.done [#allocation10], 512
    $region93: #{tpu_custom_call.1} parent=1 // pred_fallthru
      _
    %v121 = vld [vmem:[%s0] sm:$0xff]
    %v122 = vld [vmem:[%s0 + $0x8] sm:$0xff]
    %v123 = vld [vmem:[%s0 + $0x10] sm:$0xff]
    %v124 = vld [vmem:[%s0 + $0x18] sm:$0xff]
    %v125 = vld [vmem:[%s0 + $0x20] sm:$0xff]
    %v126 = vld [vmem:[%s0 + $0x28] sm:$0xff]
    %v127 = vld [vmem:[%s0 + $0x30] sm:$0xff]
    %v128 = vld [vmem:[%s0 + $0x38] sm:$0xff]
    %v129 = vld [vmem:[#allocation6] sm:$0x3f]
    %v130 = vld [vmem:[#allocation8] sm:$0x1]
    %v132 = vlaneseq
    %v133 = vshrl.u32 %v132, 7
    %v134 = vsub.s32 0, %v133
    %v135 = vrot.slane %v130, %v134
    %vm137 = vcmask 48128
    %v139 = vsel %vm137, %v121, 0
    %v142 = vsel %vm137, %v122, 0
    %v145 = vsel %vm137, %v123, 0
    %v148 = vsel %vm137, %v124, 0
    %v151 = vsel %vm137, %v125, 0
    %v154 = vsel %vm137, %v126, 0
    %v157 = vsel %vm137, %v127, 0
    %v160 = vsel %vm137, %v128, 0
    %vm162 = vcmask 1045504
    %v164 = vsel %vm162, %v129, 0
    %166 = vmatprep.subr.mxu0 0.0
    %167 = vmatpush1.msra.mxu0 %v164
    %168 = vmatprep.subr.mxu0 0.0
    %169 = vmatpush1.msra.mxu0 0.0
    %170 = vmatprep.subr.mxu0 0.0
    %171 = vmatpush1.msra.mxu0 0.0
    %172 = vmatprep.subr.mxu0 0.0
    %173 = vmatpush1.msra.mxu0 0.0
    %174 = vmatprep.subr.mxu0 0.0
    %175 = vmatpush1.msra.mxu0 0.0
    %176 = vmatprep.subr.mxu0 0.0
    %177 = vmatpush1.msra.mxu0 0.0
    %178 = vmatprep.subr.mxu0 0.0
    %179 = vmatpush1.msra.mxu0 0.0
    %180 = vmatprep.subr.mxu0 0.0
    %181 = vmatpush1.msra.mxu0 0.0
    %182 = vmatprep.subr.mxu0 0.0
    %183 = vmatpush1.msra.mxu0 0.0
    %184 = vmatprep.subr.mxu0 0.0
    %185 = vmatpush1.msra.mxu0 0.0
    %186 = vmatprep.subr.mxu0 0.0
    %187 = vmatpush1.msra.mxu0 0.0
    %188 = vmatprep.subr.mxu0 0.0
    %189 = vmatpush1.msra.mxu0 0.0
    %190 = vmatprep.subr.mxu0 0.0
    %191 = vmatpush1.msra.mxu0 0.0
    %192 = vmatprep.subr.mxu0 0.0
    %193 = vmatpush1.msra.mxu0 0.0
    %194 = vmatprep.subr.mxu0 0.0
    %195 = vmatpush1.msra.mxu0 0.0
    %196 = vmatprep.subr.mxu0 0.0
    %197 = vmatpush1.msra.mxu0 0.0
    %198 = vmatprep.subr.mxu0 0.0
    %199 = vmatpush1.msra.mxu0 0.0
    %200 = vmatprep.subr.mxu0 0.0
    %201 = vmatpush1.msra.mxu0 0.0
    %202 = vmatprep.subr.mxu0 0.0
    %203 = vmatpush1.msra.mxu0 0.0
    %204 = vmatprep.subr.mxu0 0.0
    %205 = vmatpush1.msra.mxu0 0.0
    %206 = vmatprep.subr.mxu0 0.0
    %207 = vmatpush1.msra.mxu0 0.0
    %208 = vmatprep.subr.mxu0 0.0
    %209 = vmatpush1.msra.mxu0 0.0
    %210 = vmatprep.subr.mxu0 0.0
    %211 = vmatpush1.msra.mxu0 0.0
    %212 = vmatprep.subr.mxu0 0.0
    %213 = vmatpush1.msra.mxu0 0.0
    %214 = vmatprep.subr.mxu0 0.0
    %215 = vmatpush1.msra.mxu0 0.0
    %216 = vmatprep.subr.mxu0 0.0
    %217 = vmatpush1.msra.mxu0 0.0
    %218 = vmatprep.subr.mxu0 0.0
    %219 = vmatpush1.msra.mxu0 0.0
    %220 = vmatprep.subr.mxu0 0.0
    %221 = vmatpush1.msra.mxu0 0.0
    %222 = vmatprep.subr.mxu0 0.0
    %223 = vmatpush1.msra.mxu0 0.0
    %224 = vmatprep.subr.mxu0 0.0
    %225 = vmatpush1.msra.mxu0 0.0
    %226 = vmatprep.subr.mxu0 0.0
    %227 = vmatpush1.msra.mxu0 0.0
    %228 = vmatprep.subr.mxu0 0.0
    %229 = vmatpush1.msra.mxu0 0.0
    %230 = vmatprep.mubr.f32.mxu0 0.0
    %231 = vmatmul.mubr.f32.gmra.mrb[0].mxu0 %v139
    %v232 = vpop.f32.mrb[0].mxu0
    %v233 = vadd.f32 %v135, %v232
    %v234 = vpop.f32.mrb[0].mxu0
    %235 = vmatprep.mubr.f32.mxu0 0.0
    %236 = vmatmul.mubr.f32.gmra.mrb[0].mxu0 %v142
    %v237 = vpop.f32.mrb[0].mxu0
    %v238 = vadd.f32 %v135, %v237
    %v239 = vpop.f32.mrb[0].mxu0
    %240 = vmatprep.mubr.f32.mxu0 0.0
    %241 = vmatmul.mubr.f32.gmra.mrb[0].mxu0 %v145
    %v242 = vpop.f32.mrb[0].mxu0
    %v243 = vadd.f32 %v135, %v242
    %v244 = vpop.f32.mrb[0].mxu0
    %245 = vmatprep.mubr.f32.mxu0 0.0
    %246 = vmatmul.mubr.f32.gmra.mrb[0].mxu0 %v148
    %v247 = vpop.f32.mrb[0].mxu0
    %v248 = vadd.f32 %v135, %v247
    %v249 = vpop.f32.mrb[0].mxu0
    %250 = vmatprep.mubr.f32.mxu0 0.0
    %251 = vmatmul.mubr.f32.gmra.mrb[0].mxu0 %v151
    %v252 = vpop.f32.mrb[0].mxu0
    %v253 = vadd.f32 %v135, %v252
    %v254 = vpop.f32.mrb[0].mxu0
    %255 = vmatprep.mubr.f32.mxu0 0.0
    %256 = vmatmul.mubr.f32.gmra.mrb[0].mxu0 %v154
    %v257 = vpop.f32.mrb[0].mxu0
    %v258 = vadd.f32 %v135, %v257
    %v259 = vpop.f32.mrb[0].mxu0
    %260 = vmatprep.mubr.f32.mxu0 0.0
    %261 = vmatmul.mubr.f32.gmra.mrb[0].mxu0 %v157
    %v262 = vpop.f32.mrb[0].mxu0
    %v263 = vadd.f32 %v135, %v262
    %v264 = vpop.f32.mrb[0].mxu0
    %265 = vmatprep.mubr.f32.mxu0 0.0
    %266 = vmatmul.mubr.f32.gmra.mrb[0].mxu0 %v160
    %v267 = vpop.f32.mrb[0].mxu0
    %v268 = vadd.f32 %v135, %v267
    %v269 = vpop.f32.mrb[0].mxu0
    %270 = vdwg.mxu0
    %271 = vst [vmem:[#allocation2] sm:$0xff] %v233
    %272 = vst [vmem:[#allocation2 + $0x8] sm:$0xff] %v238
    %273 = vst [vmem:[#allocation2 + $0x10] sm:$0xff] %v243
    %274 = vst [vmem:[#allocation2 + $0x18] sm:$0xff] %v248
    %275 = vst [vmem:[#allocation2 + $0x20] sm:$0xff] %v253
    %276 = vst [vmem:[#allocation2 + $0x28] sm:$0xff] %v258
    %277 = vst [vmem:[#allocation2 + $0x30] sm:$0xff] %v263
    %278 = vst [vmem:[#allocation2 + $0x38] sm:$0xff] %v268
    %v279 = vld [vmem:[#allocation2] sm:$0xff]
    %v280 = vld [vmem:[%s4] sm:$0xff]
    %v281 = vld [vmem:[%s4 + $0x8] sm:$0xff]
    %v282 = vld [vmem:[%s4 + $0x10] sm:$0xff]
    %v283 = vld [vmem:[%s4 + $0x18] sm:$0xff]
    %vm284 = vcmask 261120
    %v286 = vsel %vm284, 0.0, 0
    %288 = vmatprep.subr.mxu0 0.0
    %289 = vmatpush1.msra.mxu0 %v280
    %290 = vmatprep.subr.mxu0 0.0
    %291 = vmatpush1.msra.mxu0 %v281
    %292 = vmatprep.subr.mxu0 0.0
    %293 = vmatpush1.msra.mxu0 %v282
    %294 = vmatprep.subr.mxu0 0.0
    %295 = vmatpush1.msra.mxu0 %v283
    %296 = vmatprep.subr.mxu0 0.0
    %297 = vmatpush1.msra.mxu0 0.0
    %298 = vmatprep.subr.mxu0 0.0
    %299 = vmatpush1.msra.mxu0 0.0
    %300 = vmatprep.subr.mxu0 0.0
    %301 = vmatpush1.msra.mxu0 0.0
    %302 = vmatprep.subr.mxu0 0.0
    %303 = vmatpush1.msra.mxu0 0.0
    %304 = vmatprep.subr.mxu0 0.0
    %305 = vmatpush1.msra.mxu0 0.0
    %306 = vmatprep.subr.mxu0 0.0
    %307 = vmatpush1.msra.mxu0 0.0
    %308 = vmatprep.subr.mxu0 0.0
    %309 = vmatpush1.msra.mxu0 0.0
    %310 = vmatprep.subr.mxu0 0.0
    %311 = vmatpush1.msra.mxu0 0.0
    %312 = vmatprep.subr.mxu0 0.0
    %313 = vmatpush1.msra.mxu0 0.0
    %314 = vmatprep.subr.mxu0 0.0
    %315 = vmatpush1.msra.mxu0 0.0
    %316 = vmatprep.subr.mxu0 0.0
    %317 = vmatpush1.msra.mxu0 0.0
    %318 = vmatprep.subr.mxu0 0.0
    %319 = vmatpush1.msra.mxu0 0.0
    %320 = vmatprep.subr.mxu0 0.0
    %321 = vmatpush1.msra.mxu0 0.0
    %322 = vmatprep.subr.mxu0 0.0
    %323 = vmatpush1.msra.mxu0 0.0
    %324 = vmatprep.subr.mxu0 0.0
    %325 = vmatpush1.msra.mxu0 0.0
    %326 = vmatprep.subr.mxu0 0.0
    %327 = vmatpush1.msra.mxu0 0.0
    %328 = vmatprep.subr.mxu0 0.0
    %329 = vmatpush1.msra.mxu0 0.0
    %330 = vmatprep.subr.mxu0 0.0
    %331 = vmatpush1.msra.mxu0 0.0
    %332 = vmatprep.subr.mxu0 0.0
    %333 = vmatpush1.msra.mxu0 0.0
    %334 = vmatprep.subr.mxu0 0.0
    %335 = vmatpush1.msra.mxu0 0.0
    %336 = vmatprep.subr.mxu0 0.0
    %337 = vmatpush1.msra.mxu0 0.0
    %338 = vmatprep.subr.mxu0 0.0
    %339 = vmatpush1.msra.mxu0 0.0
    %340 = vmatprep.subr.mxu0 0.0
    %341 = vmatpush1.msra.mxu0 0.0
    %342 = vmatprep.subr.mxu0 0.0
    %343 = vmatpush1.msra.mxu0 0.0
    %344 = vmatprep.subr.mxu0 0.0
    %345 = vmatpush1.msra.mxu0 0.0
    %346 = vmatprep.subr.mxu0 0.0
    %347 = vmatpush1.msra.mxu0 0.0
    %348 = vmatprep.subr.mxu0 0.0
    %349 = vmatpush1.msra.mxu0 0.0
    %350 = vmatprep.subr.mxu0 0.0
    %351 = vmatpush1.msra.mxu0 0.0
    %352 = vmatprep.mubr.f32.mxu0 0.0
    %353 = vmatmul.mubr.f32.gmra.mrb[0].mxu0 %v286
    %v354 = vpop.f32.mrb[0].mxu0
    %v355 = vadd.f32 0.0, %v354
    %v356 = vpop.f32.mrb[0].mxu0
    %357 = vdwg.mxu0
    %v358 = vadd.f32 %v279, %v355
    %v359 = vxor.u32 %v358, 2147483648
    %v360 = vmul.f32 %v359, 1.442695
    %v361 = vpow.pop %v360
    %v362 = vadd.f32 %v361, 1.0
    %v363 = vrcp.pop %v362
    %v364 = vmul.f32 1.0, %v363
    %v365 = vmul.f32 %v364, 2.0
    %v366 = vsub.f32 %v365, 1.0
    %v367 = vmul.f32 %v364, 0.0
    %369 = vrot.lane.b32.xlu0 %v366, 64
    %v370 = vpop.permute.xlu0 %369
    %v372 = vmul.f32 %v364, %v370
    %374 = vrot.lane.b32.xlu0 %v372, 32
    %v375 = vpop.permute.xlu0 %374
    %v377 = vadd.f32 %v367, %v375
    %v378 = vtanh.pop %v377
    %380 = vrot.lane.b32.xlu0 %v378, 64
    %v381 = vpop.permute.xlu0 %380
    %v383 = vmul.f32 %v364, %v381
    %s384 = scalar_lea.vmem [#allocation2], 8
    %v385 = vld [vmem:[%s384] sm:$0xff]
    %387 = vrot.lane.b32.xlu0 %v383, 32
    %v388 = vpop.permute.xlu0 %387
    %v389 = vsel %vm284, %v388, 0
    %391 = vmatprep.subr.mxu0 0.0
    %392 = vmatpush1.msra.mxu0 %v280
    %393 = vmatprep.subr.mxu0 0.0
    %394 = vmatpush1.msra.mxu0 %v281
    %395 = vmatprep.subr.mxu0 0.0
    %396 = vmatpush1.msra.mxu0 %v282
    %397 = vmatprep.subr.mxu0 0.0
    %398 = vmatpush1.msra.mxu0 %v283
    %399 = vmatprep.subr.mxu0 0.0
    %400 = vmatpush1.msra.mxu0 0.0
    %401 = vmatprep.subr.mxu0 0.0
    %402 = vmatpush1.msra.mxu0 0.0
    %403 = vmatprep.subr.mxu0 0.0
    %404 = vmatpush1.msra.mxu0 0.0
    %405 = vmatprep.subr.mxu0 0.0
    %406 = vmatpush1.msra.mxu0 0.0
    %407 = vmatprep.subr.mxu0 0.0
    %408 = vmatpush1.msra.mxu0 0.0
    %409 = vmatprep.subr.mxu0 0.0
    %410 = vmatpush1.msra.mxu0 0.0
    %411 = vmatprep.subr.mxu0 0.0
    %412 = vmatpush1.msra.mxu0 0.0
    %413 = vmatprep.subr.mxu0 0.0
    %414 = vmatpush1.msra.mxu0 0.0
    %415 = vmatprep.subr.mxu0 0.0
    %416 = vmatpush1.msra.mxu0 0.0
    %417 = vmatprep.subr.mxu0 0.0
    %418 = vmatpush1.msra.mxu0 0.0
    %419 = vmatprep.subr.mxu0 0.0
    %420 = vmatpush1.msra.mxu0 0.0
    %421 = vmatprep.subr.mxu0 0.0
    %422 = vmatpush1.msra.mxu0 0.0
    %423 = vmatprep.subr.mxu0 0.0
    %424 = vmatpush1.msra.mxu0 0.0
    %425 = vmatprep.subr.mxu0 0.0
    %426 = vmatpush1.msra.mxu0 0.0
    %427 = vmatprep.subr.mxu0 0.0
    %428 = vmatpush1.msra.mxu0 0.0
    %429 = vmatprep.subr.mxu0 0.0
    %430 = vmatpush1.msra.mxu0 0.0
    %431 = vmatprep.subr.mxu0 0.0
    %432 = vmatpush1.msra.mxu0 0.0
    %433 = vmatprep.subr.mxu0 0.0
    %434 = vmatpush1.msra.mxu0 0.0
    %435 = vmatprep.subr.mxu0 0.0
    %436 = vmatpush1.msra.mxu0 0.0
    %437 = vmatprep.subr.mxu0 0.0
    %438 = vmatpush1.msra.mxu0 0.0
    %439 = vmatprep.subr.mxu0 0.0
    %440 = vmatpush1.msra.mxu0 0.0
    %441 = vmatprep.subr.mxu0 0.0
    %442 = vmatpush1.msra.mxu0 0.0
    %443 = vmatprep.subr.mxu0 0.0
    %444 = vmatpush1.msra.mxu0 0.0
    %445 = vmatprep.subr.mxu0 0.0
    %446 = vmatpush1.msra.mxu0 0.0
    %447 = vmatprep.subr.mxu0 0.0
    %448 = vmatpush1.msra.mxu0 0.0
    %449 = vmatprep.subr.mxu0 0.0
    %450 = vmatpush1.msra.mxu0 0.0
    %451 = vmatprep.subr.mxu0 0.0
    %452 = vmatpush1.msra.mxu0 0.0
    %453 = vmatprep.subr.mxu0 0.0
    %454 = vmatpush1.msra.mxu0 0.0
    %455 = vmatprep.mubr.f32.mxu0 0.0
    %456 = vmatmul.mubr.f32.gmra.mrb[0].mxu0 %v389
    %v457 = vpop.f32.mrb[0].mxu0
    %v458 = vadd.f32 0.0, %v457
    %v459 = vpop.f32.mrb[0].mxu0
    %460 = vdwg.mxu0
    %v461 = vadd.f32 %v385, %v458
    %v462 = vxor.u32 %v461, 2147483648
    %v463 = vmul.f32 %v462, 1.442695
    %v464 = vpow.pop %v463
    %v465 = vadd.f32 %v464, 1.0
    %v466 = vrcp.pop %v465
    %v467 = vmul.f32 1.0, %v466
    %v468 = vmul.f32 %v467, 2.0
    %v469 = vsub.f32 %v468, 1.0
    %v470 = vmul.f32 %v467, %v377
    %472 = vrot.lane.b32.xlu0 %v469, 64
    %v473 = vpop.permute.xlu0 %472
    %v475 = vmul.f32 %v467, %v473
    %477 = vrot.lane.b32.xlu0 %v475, 32
    %v478 = vpop.permute.xlu0 %477
    %v480 = vadd.f32 %v470, %v478
    %v481 = vtanh.pop %v480
    %483 = vrot.lane.b32.xlu0 %v481, 64
    %v484 = vpop.permute.xlu0 %483
    %v486 = vmul.f32 %v467, %v484
    %s487 = scalar_lea.vmem [#allocation2], 16
    %v488 = vld [vmem:[%s487] sm:$0xff]
    %490 = vrot.lane.b32.xlu0 %v486, 32
    %v491 = vpop.permute.xlu0 %490
    %v492 = vsel %vm284, %v491, 0
    %494 = vmatprep.subr.mxu0 0.0
    %495 = vmatpush1.msra.mxu0 %v280
    %496 = vmatprep.subr.mxu0 0.0
    %497 = vmatpush1.msra.mxu0 %v281
    %498 = vmatprep.subr.mxu0 0.0
    %499 = vmatpush1.msra.mxu0 %v282
    %500 = vmatprep.subr.mxu0 0.0
    %501 = vmatpush1.msra.mxu0 %v283
    %502 = vmatprep.subr.mxu0 0.0
    %503 = vmatpush1.msra.mxu0 0.0
    %504 = vmatprep.subr.mxu0 0.0
    %505 = vmatpush1.msra.mxu0 0.0
    %506 = vmatprep.subr.mxu0 0.0
    %507 = vmatpush1.msra.mxu0 0.0
    %508 = vmatprep.subr.mxu0 0.0
    %509 = vmatpush1.msra.mxu0 0.0
    %510 = vmatprep.subr.mxu0 0.0
    %511 = vmatpush1.msra.mxu0 0.0
    %512 = vmatprep.subr.mxu0 0.0
    %513 = vmatpush1.msra.mxu0 0.0
    %514 = vmatprep.subr.mxu0 0.0
    %515 = vmatpush1.msra.mxu0 0.0
    %516 = vmatprep.subr.mxu0 0.0
    %517 = vmatpush1.msra.mxu0 0.0
    %518 = vmatprep.subr.mxu0 0.0
    %519 = vmatpush1.msra.mxu0 0.0
    %520 = vmatprep.subr.mxu0 0.0
    %521 = vmatpush1.msra.mxu0 0.0
    %522 = vmatprep.subr.mxu0 0.0
    %523 = vmatpush1.msra.mxu0 0.0
    %524 = vmatprep.subr.mxu0 0.0
    %525 = vmatpush1.msra.mxu0 0.0
    %526 = vmatprep.subr.mxu0 0.0
    %527 = vmatpush1.msra.mxu0 0.0
    %528 = vmatprep.subr.mxu0 0.0
    %529 = vmatpush1.msra.mxu0 0.0
    %530 = vmatprep.subr.mxu0 0.0
    %531 = vmatpush1.msra.mxu0 0.0
    %532 = vmatprep.subr.mxu0 0.0
    %533 = vmatpush1.msra.mxu0 0.0
    %534 = vmatprep.subr.mxu0 0.0
    %535 = vmatpush1.msra.mxu0 0.0
    %536 = vmatprep.subr.mxu0 0.0
    %537 = vmatpush1.msra.mxu0 0.0
    %538 = vmatprep.subr.mxu0 0.0
    %539 = vmatpush1.msra.mxu0 0.0
    %540 = vmatprep.subr.mxu0 0.0
    %541 = vmatpush1.msra.mxu0 0.0
    %542 = vmatprep.subr.mxu0 0.0
    %543 = vmatpush1.msra.mxu0 0.0
    %544 = vmatprep.subr.mxu0 0.0
    %545 = vmatpush1.msra.mxu0 0.0
    %546 = vmatprep.subr.mxu0 0.0
    %547 = vmatpush1.msra.mxu0 0.0
    %548 = vmatprep.subr.mxu0 0.0
    %549 = vmatpush1.msra.mxu0 0.0
    %550 = vmatprep.subr.mxu0 0.0
    %551 = vmatpush1.msra.mxu0 0.0
    %552 = vmatprep.subr.mxu0 0.0
    %553 = vmatpush1.msra.mxu0 0.0
    %554 = vmatprep.subr.mxu0 0.0
    %555 = vmatpush1.msra.mxu0 0.0
    %556 = vmatprep.subr.mxu0 0.0
    %557 = vmatpush1.msra.mxu0 0.0
    %558 = vmatprep.mubr.f32.mxu0 0.0
    %559 = vmatmul.mubr.f32.gmra.mrb[0].mxu0 %v492
    %v560 = vpop.f32.mrb[0].mxu0
    %v561 = vadd.f32 0.0, %v560
    %v562 = vpop.f32.mrb[0].mxu0
    %563 = vdwg.mxu0
    %v564 = vadd.f32 %v488, %v561
    %v565 = vxor.u32 %v564, 2147483648
    %v566 = vmul.f32 %v565, 1.442695
    %v567 = vpow.pop %v566
    %v568 = vadd.f32 %v567, 1.0
    %v569 = vrcp.pop %v568
    %v570 = vmul.f32 1.0, %v569
    %v571 = vmul.f32 %v570, 2.0
    %v572 = vsub.f32 %v571, 1.0
    %v573 = vmul.f32 %v570, %v480
    %575 = vrot.lane.b32.xlu0 %v572, 64
    %v576 = vpop.permute.xlu0 %575
    %v578 = vmul.f32 %v570, %v576
    %580 = vrot.lane.b32.xlu0 %v578, 32
    %v581 = vpop.permute.xlu0 %580
    %v583 = vadd.f32 %v573, %v581
    %v584 = vtanh.pop %v583
    %586 = vrot.lane.b32.xlu0 %v584, 64
    %v587 = vpop.permute.xlu0 %586
    %v589 = vmul.f32 %v570, %v587
    %s590 = scalar_lea.vmem [#allocation2], 24
    %v591 = vld [vmem:[%s590] sm:$0xff]
    %593 = vrot.lane.b32.xlu0 %v589, 32
    %v594 = vpop.permute.xlu0 %593
    %v595 = vsel %vm284, %v594, 0
    %597 = vmatprep.subr.mxu0 0.0
    %598 = vmatpush1.msra.mxu0 %v280
    %599 = vmatprep.subr.mxu0 0.0
    %600 = vmatpush1.msra.mxu0 %v281
    %601 = vmatprep.subr.mxu0 0.0
    %602 = vmatpush1.msra.mxu0 %v282
    %603 = vmatprep.subr.mxu0 0.0
    %604 = vmatpush1.msra.mxu0 %v283
    %605 = vmatprep.subr.mxu0 0.0
    %606 = vmatpush1.msra.mxu0 0.0
    %607 = vmatprep.subr.mxu0 0.0
    %608 = vmatpush1.msra.mxu0 0.0
    %609 = vmatprep.subr.mxu0 0.0
    %610 = vmatpush1.msra.mxu0 0.0
    %611 = vmatprep.subr.mxu0 0.0
    %612 = vmatpush1.msra.mxu0 0.0
    %613 = vmatprep.subr.mxu0 0.0
    %614 = vmatpush1.msra.mxu0 0.0
    %615 = vmatprep.subr.mxu0 0.0
    %616 = vmatpush1.msra.mxu0 0.0
    %617 = vmatprep.subr.mxu0 0.0
    %618 = vmatpush1.msra.mxu0 0.0
    %619 = vmatprep.subr.mxu0 0.0
    %620 = vmatpush1.msra.mxu0 0.0
    %621 = vmatprep.subr.mxu0 0.0
    %622 = vmatpush1.msra.mxu0 0.0
    %623 = vmatprep.subr.mxu0 0.0
    %624 = vmatpush1.msra.mxu0 0.0
    %625 = vmatprep.subr.mxu0 0.0
    %626 = vmatpush1.msra.mxu0 0.0
    %627 = vmatprep.subr.mxu0 0.0
    %628 = vmatpush1.msra.mxu0 0.0
    %629 = vmatprep.subr.mxu0 0.0
    %630 = vmatpush1.msra.mxu0 0.0
    %631 = vmatprep.subr.mxu0 0.0
    %632 = vmatpush1.msra.mxu0 0.0
    %633 = vmatprep.subr.mxu0 0.0
    %634 = vmatpush1.msra.mxu0 0.0
    %635 = vmatprep.subr.mxu0 0.0
    %636 = vmatpush1.msra.mxu0 0.0
    %637 = vmatprep.subr.mxu0 0.0
    %638 = vmatpush1.msra.mxu0 0.0
    %639 = vmatprep.subr.mxu0 0.0
    %640 = vmatpush1.msra.mxu0 0.0
    %641 = vmatprep.subr.mxu0 0.0
    %642 = vmatpush1.msra.mxu0 0.0
    %643 = vmatprep.subr.mxu0 0.0
    %644 = vmatpush1.msra.mxu0 0.0
    %645 = vmatprep.subr.mxu0 0.0
    %646 = vmatpush1.msra.mxu0 0.0
    %647 = vmatprep.subr.mxu0 0.0
    %648 = vmatpush1.msra.mxu0 0.0
    %649 = vmatprep.subr.mxu0 0.0
    %650 = vmatpush1.msra.mxu0 0.0
    %651 = vmatprep.subr.mxu0 0.0
    %652 = vmatpush1.msra.mxu0 0.0
    %653 = vmatprep.subr.mxu0 0.0
    %654 = vmatpush1.msra.mxu0 0.0
    %655 = vmatprep.subr.mxu0 0.0
    %656 = vmatpush1.msra.mxu0 0.0
    %657 = vmatprep.subr.mxu0 0.0
    %658 = vmatpush1.msra.mxu0 0.0
    %659 = vmatprep.subr.mxu0 0.0
    %660 = vmatpush1.msra.mxu0 0.0
    %661 = vmatprep.mubr.f32.mxu0 0.0
    %662 = vmatmul.mubr.f32.gmra.mrb[0].mxu0 %v595
    %v663 = vpop.f32.mrb[0].mxu0
    %v664 = vadd.f32 0.0, %v663
    %v665 = vpop.f32.mrb[0].mxu0
    %666 = vdwg.mxu0
    %v667 = vadd.f32 %v591, %v664
    %v668 = vxor.u32 %v667, 2147483648
    %v669 = vmul.f32 %v668, 1.442695
    %v670 = vpow.pop %v669
    %v671 = vadd.f32 %v670, 1.0
    %v672 = vrcp.pop %v671
    %v673 = vmul.f32 1.0, %v672
    %v674 = vmul.f32 %v673, 2.0
    %v675 = vsub.f32 %v674, 1.0
    %v676 = vmul.f32 %v673, %v583
    %678 = vrot.lane.b32.xlu0 %v675, 64
    %v679 = vpop.permute.xlu0 %678
    %v681 = vmul.f32 %v673, %v679
    %683 = vrot.lane.b32.xlu0 %v681, 32
    %v684 = vpop.permute.xlu0 %683
    %v686 = vadd.f32 %v676, %v684
    %v687 = vtanh.pop %v686
    %689 = vrot.lane.b32.xlu0 %v687, 64
    %v690 = vpop.permute.xlu0 %689
    %v692 = vmul.f32 %v673, %v690
    %s693 = scalar_lea.vmem [#allocation2], 32
    %v694 = vld [vmem:[%s693] sm:$0xff]
    %696 = vrot.lane.b32.xlu0 %v692, 32
    %v697 = vpop.permute.xlu0 %696
    %v698 = vsel %vm284, %v697, 0
    %700 = vmatprep.subr.mxu0 0.0
    %701 = vmatpush1.msra.mxu0 %v280
    %702 = vmatprep.subr.mxu0 0.0
    %703 = vmatpush1.msra.mxu0 %v281
    %704 = vmatprep.subr.mxu0 0.0
    %705 = vmatpush1.msra.mxu0 %v282
    %706 = vmatprep.subr.mxu0 0.0
    %707 = vmatpush1.msra.mxu0 %v283
    %708 = vmatprep.subr.mxu0 0.0
    %709 = vmatpush1.msra.mxu0 0.0
    %710 = vmatprep.subr.mxu0 0.0
    %711 = vmatpush1.msra.mxu0 0.0
    %712 = vmatprep.subr.mxu0 0.0
    %713 = vmatpush1.msra.mxu0 0.0
    %714 = vmatprep.subr.mxu0 0.0
    %715 = vmatpush1.msra.mxu0 0.0
    %716 = vmatprep.subr.mxu0 0.0
    %717 = vmatpush1.msra.mxu0 0.0
    %718 = vmatprep.subr.mxu0 0.0
    %719 = vmatpush1.msra.mxu0 0.0
    %720 = vmatprep.subr.mxu0 0.0
    %721 = vmatpush1.msra.mxu0 0.0
    %722 = vmatprep.subr.mxu0 0.0
    %723 = vmatpush1.msra.mxu0 0.0
    %724 = vmatprep.subr.mxu0 0.0
    %725 = vmatpush1.msra.mxu0 0.0
    %726 = vmatprep.subr.mxu0 0.0
    %727 = vmatpush1.msra.mxu0 0.0
    %728 = vmatprep.subr.mxu0 0.0
    %729 = vmatpush1.msra.mxu0 0.0
    %730 = vmatprep.subr.mxu0 0.0
    %731 = vmatpush1.msra.mxu0 0.0
    %732 = vmatprep.subr.mxu0 0.0
    %733 = vmatpush1.msra.mxu0 0.0
    %734 = vmatprep.subr.mxu0 0.0
    %735 = vmatpush1.msra.mxu0 0.0
    %736 = vmatprep.subr.mxu0 0.0
    %737 = vmatpush1.msra.mxu0 0.0
    %738 = vmatprep.subr.mxu0 0.0
    %739 = vmatpush1.msra.mxu0 0.0
    %740 = vmatprep.subr.mxu0 0.0
    %741 = vmatpush1.msra.mxu0 0.0
    %742 = vmatprep.subr.mxu0 0.0
    %743 = vmatpush1.msra.mxu0 0.0
    %744 = vmatprep.subr.mxu0 0.0
    %745 = vmatpush1.msra.mxu0 0.0
    %746 = vmatprep.subr.mxu0 0.0
    %747 = vmatpush1.msra.mxu0 0.0
    %748 = vmatprep.subr.mxu0 0.0
    %749 = vmatpush1.msra.mxu0 0.0
    %750 = vmatprep.subr.mxu0 0.0
    %751 = vmatpush1.msra.mxu0 0.0
    %752 = vmatprep.subr.mxu0 0.0
    %753 = vmatpush1.msra.mxu0 0.0
    %754 = vmatprep.subr.mxu0 0.0
    %755 = vmatpush1.msra.mxu0 0.0
    %756 = vmatprep.subr.mxu0 0.0
    %757 = vmatpush1.msra.mxu0 0.0
    %758 = vmatprep.subr.mxu0 0.0
    %759 = vmatpush1.msra.mxu0 0.0
    %760 = vmatprep.subr.mxu0 0.0
    %761 = vmatpush1.msra.mxu0 0.0
    %762 = vmatprep.subr.mxu0 0.0
    %763 = vmatpush1.msra.mxu0 0.0
    %764 = vmatprep.mubr.f32.mxu0 0.0
    %765 = vmatmul.mubr.f32.gmra.mrb[0].mxu0 %v698
    %v766 = vpop.f32.mrb[0].mxu0
    %v767 = vadd.f32 0.0, %v766
    %v768 = vpop.f32.mrb[0].mxu0
    %769 = vdwg.mxu0
    %v770 = vadd.f32 %v694, %v767
    %v771 = vxor.u32 %v770, 2147483648
    %v772 = vmul.f32 %v771, 1.442695
    %v773 = vpow.pop %v772
    %v774 = vadd.f32 %v773, 1.0
    %v775 = vrcp.pop %v774
    %v776 = vmul.f32 1.0, %v775
    %v777 = vmul.f32 %v776, 2.0
    %v778 = vsub.f32 %v777, 1.0
    %v779 = vmul.f32 %v776, %v686
    %781 = vrot.lane.b32.xlu0 %v778, 64
    %v782 = vpop.permute.xlu0 %781
    %v784 = vmul.f32 %v776, %v782
    %786 = vrot.lane.b32.xlu0 %v784, 32
    %v787 = vpop.permute.xlu0 %786
    %v789 = vadd.f32 %v779, %v787
    %v790 = vtanh.pop %v789
    %792 = vrot.lane.b32.xlu0 %v790, 64
    %v793 = vpop.permute.xlu0 %792
    %v795 = vmul.f32 %v776, %v793
    %s796 = scalar_lea.vmem [#allocation2], 40
    %v797 = vld [vmem:[%s796] sm:$0xff]
    %799 = vrot.lane.b32.xlu0 %v795, 32
    %v800 = vpop.permute.xlu0 %799
    %v801 = vsel %vm284, %v800, 0
    %803 = vmatprep.subr.mxu0 0.0
    %804 = vmatpush1.msra.mxu0 %v280
    %805 = vmatprep.subr.mxu0 0.0
    %806 = vmatpush1.msra.mxu0 %v281
    %807 = vmatprep.subr.mxu0 0.0
    %808 = vmatpush1.msra.mxu0 %v282
    %809 = vmatprep.subr.mxu0 0.0
    %810 = vmatpush1.msra.mxu0 %v283
    %811 = vmatprep.subr.mxu0 0.0
    %812 = vmatpush1.msra.mxu0 0.0
    %813 = vmatprep.subr.mxu0 0.0
    %814 = vmatpush1.msra.mxu0 0.0
    %815 = vmatprep.subr.mxu0 0.0
    %816 = vmatpush1.msra.mxu0 0.0
    %817 = vmatprep.subr.mxu0 0.0
    %818 = vmatpush1.msra.mxu0 0.0
    %819 = vmatprep.subr.mxu0 0.0
    %820 = vmatpush1.msra.mxu0 0.0
    %821 = vmatprep.subr.mxu0 0.0
    %822 = vmatpush1.msra.mxu0 0.0
    %823 = vmatprep.subr.mxu0 0.0
    %824 = vmatpush1.msra.mxu0 0.0
    %825 = vmatprep.subr.mxu0 0.0
    %826 = vmatpush1.msra.mxu0 0.0
    %827 = vmatprep.subr.mxu0 0.0
    %828 = vmatpush1.msra.mxu0 0.0
    %829 = vmatprep.subr.mxu0 0.0
    %830 = vmatpush1.msra.mxu0 0.0
    %831 = vmatprep.subr.mxu0 0.0
    %832 = vmatpush1.msra.mxu0 0.0
    %833 = vmatprep.subr.mxu0 0.0
    %834 = vmatpush1.msra.mxu0 0.0
    %835 = vmatprep.subr.mxu0 0.0
    %836 = vmatpush1.msra.mxu0 0.0
    %837 = vmatprep.subr.mxu0 0.0
    %838 = vmatpush1.msra.mxu0 0.0
    %839 = vmatprep.subr.mxu0 0.0
    %840 = vmatpush1.msra.mxu0 0.0
    %841 = vmatprep.subr.mxu0 0.0
    %842 = vmatpush1.msra.mxu0 0.0
    %843 = vmatprep.subr.mxu0 0.0
    %844 = vmatpush1.msra.mxu0 0.0
    %845 = vmatprep.subr.mxu0 0.0
    %846 = vmatpush1.msra.mxu0 0.0
    %847 = vmatprep.subr.mxu0 0.0
    %848 = vmatpush1.msra.mxu0 0.0
    %849 = vmatprep.subr.mxu0 0.0
    %850 = vmatpush1.msra.mxu0 0.0
    %851 = vmatprep.subr.mxu0 0.0
    %852 = vmatpush1.msra.mxu0 0.0
    %853 = vmatprep.subr.mxu0 0.0
    %854 = vmatpush1.msra.mxu0 0.0
    %855 = vmatprep.subr.mxu0 0.0
    %856 = vmatpush1.msra.mxu0 0.0
    %857 = vmatprep.subr.mxu0 0.0
    %858 = vmatpush1.msra.mxu0 0.0
    %859 = vmatprep.subr.mxu0 0.0
    %860 = vmatpush1.msra.mxu0 0.0
    %861 = vmatprep.subr.mxu0 0.0
    %862 = vmatpush1.msra.mxu0 0.0
    %863 = vmatprep.subr.mxu0 0.0
    %864 = vmatpush1.msra.mxu0 0.0
    %865 = vmatprep.subr.mxu0 0.0
    %866 = vmatpush1.msra.mxu0 0.0
    %867 = vmatprep.mubr.f32.mxu0 0.0
    %868 = vmatmul.mubr.f32.gmra.mrb[0].mxu0 %v801
    %v869 = vpop.f32.mrb[0].mxu0
    %v870 = vadd.f32 0.0, %v869
    %v871 = vpop.f32.mrb[0].mxu0
    %872 = vdwg.mxu0
    %v873 = vadd.f32 %v797, %v870
    %v874 = vxor.u32 %v873, 2147483648
    %v875 = vmul.f32 %v874, 1.442695
    %v876 = vpow.pop %v875
    %v877 = vadd.f32 %v876, 1.0
    %v878 = vrcp.pop %v877
    %v879 = vmul.f32 1.0, %v878
    %v880 = vmul.f32 %v879, 2.0
    %v881 = vsub.f32 %v880, 1.0
    %v882 = vmul.f32 %v879, %v789
    %884 = vrot.lane.b32.xlu0 %v881, 64
    %v885 = vpop.permute.xlu0 %884
    %v887 = vmul.f32 %v879, %v885
    %889 = vrot.lane.b32.xlu0 %v887, 32
    %v890 = vpop.permute.xlu0 %889
    %v892 = vadd.f32 %v882, %v890
    %v893 = vtanh.pop %v892
    %895 = vrot.lane.b32.xlu0 %v893, 64
    %v896 = vpop.permute.xlu0 %895
    %v898 = vmul.f32 %v879, %v896
    %s899 = scalar_lea.vmem [#allocation2], 48
    %v900 = vld [vmem:[%s899] sm:$0xff]
    %902 = vrot.lane.b32.xlu0 %v898, 32
    %v903 = vpop.permute.xlu0 %902
    %v904 = vsel %vm284, %v903, 0
    %906 = vmatprep.subr.mxu0 0.0
    %907 = vmatpush1.msra.mxu0 %v280
    %908 = vmatprep.subr.mxu0 0.0
    %909 = vmatpush1.msra.mxu0 %v281
    %910 = vmatprep.subr.mxu0 0.0
    %911 = vmatpush1.msra.mxu0 %v282
    %912 = vmatprep.subr.mxu0 0.0
    %913 = vmatpush1.msra.mxu0 %v283
    %914 = vmatprep.subr.mxu0 0.0
    %915 = vmatpush1.msra.mxu0 0.0
    %916 = vmatprep.subr.mxu0 0.0
    %917 = vmatpush1.msra.mxu0 0.0
    %918 = vmatprep.subr.mxu0 0.0
    %919 = vmatpush1.msra.mxu0 0.0
    %920 = vmatprep.subr.mxu0 0.0
    %921 = vmatpush1.msra.mxu0 0.0
    %922 = vmatprep.subr.mxu0 0.0
    %923 = vmatpush1.msra.mxu0 0.0
    %924 = vmatprep.subr.mxu0 0.0
    %925 = vmatpush1.msra.mxu0 0.0
    %926 = vmatprep.subr.mxu0 0.0
    %927 = vmatpush1.msra.mxu0 0.0
    %928 = vmatprep.subr.mxu0 0.0
    %929 = vmatpush1.msra.mxu0 0.0
    %930 = vmatprep.subr.mxu0 0.0
    %931 = vmatpush1.msra.mxu0 0.0
    %932 = vmatprep.subr.mxu0 0.0
    %933 = vmatpush1.msra.mxu0 0.0
    %934 = vmatprep.subr.mxu0 0.0
    %935 = vmatpush1.msra.mxu0 0.0
    %936 = vmatprep.subr.mxu0 0.0
    %937 = vmatpush1.msra.mxu0 0.0
    %938 = vmatprep.subr.mxu0 0.0
    %939 = vmatpush1.msra.mxu0 0.0
    %940 = vmatprep.subr.mxu0 0.0
    %941 = vmatpush1.msra.mxu0 0.0
    %942 = vmatprep.subr.mxu0 0.0
    %943 = vmatpush1.msra.mxu0 0.0
    %944 = vmatprep.subr.mxu0 0.0
    %945 = vmatpush1.msra.mxu0 0.0
    %946 = vmatprep.subr.mxu0 0.0
    %947 = vmatpush1.msra.mxu0 0.0
    %948 = vmatprep.subr.mxu0 0.0
    %949 = vmatpush1.msra.mxu0 0.0
    %950 = vmatprep.subr.mxu0 0.0
    %951 = vmatpush1.msra.mxu0 0.0
    %952 = vmatprep.subr.mxu0 0.0
    %953 = vmatpush1.msra.mxu0 0.0
    %954 = vmatprep.subr.mxu0 0.0
    %955 = vmatpush1.msra.mxu0 0.0
    %956 = vmatprep.subr.mxu0 0.0
    %957 = vmatpush1.msra.mxu0 0.0
    %958 = vmatprep.subr.mxu0 0.0
    %959 = vmatpush1.msra.mxu0 0.0
    %960 = vmatprep.subr.mxu0 0.0
    %961 = vmatpush1.msra.mxu0 0.0
    %962 = vmatprep.subr.mxu0 0.0
    %963 = vmatpush1.msra.mxu0 0.0
    %964 = vmatprep.subr.mxu0 0.0
    %965 = vmatpush1.msra.mxu0 0.0
    %966 = vmatprep.subr.mxu0 0.0
    %967 = vmatpush1.msra.mxu0 0.0
    %968 = vmatprep.subr.mxu0 0.0
    %969 = vmatpush1.msra.mxu0 0.0
    %970 = vmatprep.mubr.f32.mxu0 0.0
    %971 = vmatmul.mubr.f32.gmra.mrb[0].mxu0 %v904
    %v972 = vpop.f32.mrb[0].mxu0
    %v973 = vadd.f32 0.0, %v972
    %v974 = vpop.f32.mrb[0].mxu0
    %975 = vdwg.mxu0
    %v976 = vadd.f32 %v900, %v973
    %v977 = vxor.u32 %v976, 2147483648
    %v978 = vmul.f32 %v977, 1.442695
    %v979 = vpow.pop %v978
    %v980 = vadd.f32 %v979, 1.0
    %v981 = vrcp.pop %v980
    %v982 = vmul.f32 1.0, %v981
    %v983 = vmul.f32 %v982, 2.0
    %v984 = vsub.f32 %v983, 1.0
    %v985 = vmul.f32 %v982, %v892
    %987 = vrot.lane.b32.xlu0 %v984, 64
    %v988 = vpop.permute.xlu0 %987
    %v990 = vmul.f32 %v982, %v988
    %992 = vrot.lane.b32.xlu0 %v990, 32
    %v993 = vpop.permute.xlu0 %992
    %v995 = vadd.f32 %v985, %v993
    %v996 = vtanh.pop %v995
    %998 = vrot.lane.b32.xlu0 %v996, 64
    %v999 = vpop.permute.xlu0 %998
    %v1001 = vmul.f32 %v982, %v999
    %s1002 = scalar_lea.vmem [#allocation2], 56
    %v1003 = vld [vmem:[%s1002] sm:$0xff]
    %1005 = vrot.lane.b32.xlu0 %v1001, 32
    %v1006 = vpop.permute.xlu0 %1005
    %v1007 = vsel %vm284, %v1006, 0
    %1009 = vmatprep.subr.mxu0 0.0
    %1010 = vmatpush1.msra.mxu0 %v280
    %1011 = vmatprep.subr.mxu0 0.0
    %1012 = vmatpush1.msra.mxu0 %v281
    %1013 = vmatprep.subr.mxu0 0.0
    %1014 = vmatpush1.msra.mxu0 %v282
    %1015 = vmatprep.subr.mxu0 0.0
    %1016 = vmatpush1.msra.mxu0 %v283
    %1017 = vmatprep.subr.mxu0 0.0
    %1018 = vmatpush1.msra.mxu0 0.0
    %1019 = vmatprep.subr.mxu0 0.0
    %1020 = vmatpush1.msra.mxu0 0.0
    %1021 = vmatprep.subr.mxu0 0.0
    %1022 = vmatpush1.msra.mxu0 0.0
    %1023 = vmatprep.subr.mxu0 0.0
    %1024 = vmatpush1.msra.mxu0 0.0
    %1025 = vmatprep.subr.mxu0 0.0
    %1026 = vmatpush1.msra.mxu0 0.0
    %1027 = vmatprep.subr.mxu0 0.0
    %1028 = vmatpush1.msra.mxu0 0.0
    %1029 = vmatprep.subr.mxu0 0.0
    %1030 = vmatpush1.msra.mxu0 0.0
    %1031 = vmatprep.subr.mxu0 0.0
    %1032 = vmatpush1.msra.mxu0 0.0
    %1033 = vmatprep.subr.mxu0 0.0
    %1034 = vmatpush1.msra.mxu0 0.0
    %1035 = vmatprep.subr.mxu0 0.0
    %1036 = vmatpush1.msra.mxu0 0.0
    %1037 = vmatprep.subr.mxu0 0.0
    %1038 = vmatpush1.msra.mxu0 0.0
    %1039 = vmatprep.subr.mxu0 0.0
    %1040 = vmatpush1.msra.mxu0 0.0
    %1041 = vmatprep.subr.mxu0 0.0
    %1042 = vmatpush1.msra.mxu0 0.0
    %1043 = vmatprep.subr.mxu0 0.0
    %1044 = vmatpush1.msra.mxu0 0.0
    %1045 = vmatprep.subr.mxu0 0.0
    %1046 = vmatpush1.msra.mxu0 0.0
    %1047 = vmatprep.subr.mxu0 0.0
    %1048 = vmatpush1.msra.mxu0 0.0
    %1049 = vmatprep.subr.mxu0 0.0
    %1050 = vmatpush1.msra.mxu0 0.0
    %1051 = vmatprep.subr.mxu0 0.0
    %1052 = vmatpush1.msra.mxu0 0.0
    %1053 = vmatprep.subr.mxu0 0.0
    %1054 = vmatpush1.msra.mxu0 0.0
    %1055 = vmatprep.subr.mxu0 0.0
    %1056 = vmatpush1.msra.mxu0 0.0
    %1057 = vmatprep.subr.mxu0 0.0
    %1058 = vmatpush1.msra.mxu0 0.0
    %1059 = vmatprep.subr.mxu0 0.0
    %1060 = vmatpush1.msra.mxu0 0.0
    %1061 = vmatprep.subr.mxu0 0.0
    %1062 = vmatpush1.msra.mxu0 0.0
    %1063 = vmatprep.subr.mxu0 0.0
    %1064 = vmatpush1.msra.mxu0 0.0
    %1065 = vmatprep.subr.mxu0 0.0
    %1066 = vmatpush1.msra.mxu0 0.0
    %1067 = vmatprep.subr.mxu0 0.0
    %1068 = vmatpush1.msra.mxu0 0.0
    %1069 = vmatprep.subr.mxu0 0.0
    %1070 = vmatpush1.msra.mxu0 0.0
    %1071 = vmatprep.subr.mxu0 0.0
    %1072 = vmatpush1.msra.mxu0 0.0
    %1073 = vmatprep.mubr.f32.mxu0 0.0
    %1074 = vmatmul.mubr.f32.gmra.mrb[0].mxu0 %v1007
    %v1075 = vpop.f32.mrb[0].mxu0
    %v1076 = vadd.f32 0.0, %v1075
    %v1077 = vpop.f32.mrb[0].mxu0
    %1078 = vdwg.mxu0
    %v1079 = vadd.f32 %v1003, %v1076
    %v1080 = vxor.u32 %v1079, 2147483648
    %v1081 = vmul.f32 %v1080, 1.442695
    %v1082 = vpow.pop %v1081
    %v1083 = vadd.f32 %v1082, 1.0
    %v1084 = vrcp.pop %v1083
    %v1085 = vmul.f32 1.0, %v1084
    %v1086 = vmul.f32 %v1085, 2.0
    %v1087 = vsub.f32 %v1086, 1.0
    %v1088 = vmul.f32 %v1085, %v995
    %1090 = vrot.lane.b32.xlu0 %v1087, 64
    %v1091 = vpop.permute.xlu0 %1090
    %v1093 = vmul.f32 %v1085, %v1091
    %1095 = vrot.lane.b32.xlu0 %v1093, 32
    %v1096 = vpop.permute.xlu0 %1095
    %v1098 = vadd.f32 %v1088, %v1096
    %v1099 = vtanh.pop %v1098
    %1101 = vrot.lane.b32.xlu0 %v1099, 64
    %v1102 = vpop.permute.xlu0 %1101
    %v1104 = vmul.f32 %v1085, %v1102
    %v1105 = vld [vmem:[#allocation4] sm:$0xff]
    %v1106 = vld [vmem:[%s5] sm:$0xff]
    %v1107 = vld [vmem:[%s5 + $0x8] sm:$0xff]
    %v1108 = vld [vmem:[%s5 + $0x10] sm:$0xff]
    %v1109 = vld [vmem:[%s5 + $0x18] sm:$0xff]
    %v1110 = vld [vmem:[%s6] sm:$0x1]
    %v1112 = vlaneseq
    %v1113 = vshrl.u32 %v1112, 7
    %v1114 = vsub.s32 0, %v1113
    %v1115 = vrot.slane %v1110, %v1114
    %v1118 = vsel %vm284, %v1105, 0
    %1120 = vmatprep.subr.mxu0 0.0
    %1121 = vmatpush1.msra.mxu0 %v1106
    %1122 = vmatprep.subr.mxu0 0.0
    %1123 = vmatpush1.msra.mxu0 %v1107
    %1124 = vmatprep.subr.mxu0 0.0
    %1125 = vmatpush1.msra.mxu0 %v1108
    %1126 = vmatprep.subr.mxu0 0.0
    %1127 = vmatpush1.msra.mxu0 %v1109
    %1128 = vmatprep.subr.mxu0 0.0
    %1129 = vmatpush1.msra.mxu0 0.0
    %1130 = vmatprep.subr.mxu0 0.0
    %1131 = vmatpush1.msra.mxu0 0.0
    %1132 = vmatprep.subr.mxu0 0.0
    %1133 = vmatpush1.msra.mxu0 0.0
    %1134 = vmatprep.subr.mxu0 0.0
    %1135 = vmatpush1.msra.mxu0 0.0
    %1136 = vmatprep.subr.mxu0 0.0
    %1137 = vmatpush1.msra.mxu0 0.0
    %1138 = vmatprep.subr.mxu0 0.0
    %1139 = vmatpush1.msra.mxu0 0.0
    %1140 = vmatprep.subr.mxu0 0.0
    %1141 = vmatpush1.msra.mxu0 0.0
    %1142 = vmatprep.subr.mxu0 0.0
    %1143 = vmatpush1.msra.mxu0 0.0
    %1144 = vmatprep.subr.mxu0 0.0
    %1145 = vmatpush1.msra.mxu0 0.0
    %1146 = vmatprep.subr.mxu0 0.0
    %1147 = vmatpush1.msra.mxu0 0.0
    %1148 = vmatprep.subr.mxu0 0.0
    %1149 = vmatpush1.msra.mxu0 0.0
    %1150 = vmatprep.subr.mxu0 0.0
    %1151 = vmatpush1.msra.mxu0 0.0
    %1152 = vmatprep.subr.mxu0 0.0
    %1153 = vmatpush1.msra.mxu0 0.0
    %1154 = vmatprep.subr.mxu0 0.0
    %1155 = vmatpush1.msra.mxu0 0.0
    %1156 = vmatprep.subr.mxu0 0.0
    %1157 = vmatpush1.msra.mxu0 0.0
    %1158 = vmatprep.subr.mxu0 0.0
    %1159 = vmatpush1.msra.mxu0 0.0
    %1160 = vmatprep.subr.mxu0 0.0
    %1161 = vmatpush1.msra.mxu0 0.0
    %1162 = vmatprep.subr.mxu0 0.0
    %1163 = vmatpush1.msra.mxu0 0.0
    %1164 = vmatprep.subr.mxu0 0.0
    %1165 = vmatpush1.msra.mxu0 0.0
    %1166 = vmatprep.subr.mxu0 0.0
    %1167 = vmatpush1.msra.mxu0 0.0
    %1168 = vmatprep.subr.mxu0 0.0
    %1169 = vmatpush1.msra.mxu0 0.0
    %1170 = vmatprep.subr.mxu0 0.0
    %1171 = vmatpush1.msra.mxu0 0.0
    %1172 = vmatprep.subr.mxu0 0.0
    %1173 = vmatpush1.msra.mxu0 0.0
    %1174 = vmatprep.subr.mxu0 0.0
    %1175 = vmatpush1.msra.mxu0 0.0
    %1176 = vmatprep.subr.mxu0 0.0
    %1177 = vmatpush1.msra.mxu0 0.0
    %1178 = vmatprep.subr.mxu0 0.0
    %1179 = vmatpush1.msra.mxu0 0.0
    %1180 = vmatprep.subr.mxu0 0.0
    %1181 = vmatpush1.msra.mxu0 0.0
    %1182 = vmatprep.subr.mxu0 0.0
    %1183 = vmatpush1.msra.mxu0 0.0
    %1184 = vmatprep.mubr.f32.mxu0 0.0
    %1185 = vmatmul.mubr.f32.gmra.mrb[0].mxu0 %v1118
    %v1186 = vpop.f32.mrb[0].mxu0
    %v1187 = vadd.f32 %v1115, %v1186
    %v1188 = vpop.f32.mrb[0].mxu0
    %1189 = vdwg.mxu0
    %v1190 = vmax.f32 %v1187, 0.0
    %v1191 = vld [vmem:[%s7] sm:$0xff]
    %v1192 = vld [vmem:[%s7 + $0x8] sm:$0xff]
    %v1193 = vld [vmem:[%s7 + $0x10] sm:$0xff]
    %v1194 = vld [vmem:[%s7 + $0x18] sm:$0xff]
    %v1195 = vld [vmem:[%s8] sm:$0x1]
    %v1197 = vlaneseq
    %v1198 = vshrl.u32 %v1197, 7
    %v1199 = vsub.s32 0, %v1198
    %v1200 = vrot.slane %v1195, %v1199
    %v1203 = vsel %vm284, %v1190, 0
    %1205 = vmatprep.subr.mxu0 0.0
    %1206 = vmatpush1.msra.mxu0 %v1191
    %1207 = vmatprep.subr.mxu0 0.0
    %1208 = vmatpush1.msra.mxu0 %v1192
    %1209 = vmatprep.subr.mxu0 0.0
    %1210 = vmatpush1.msra.mxu0 %v1193
    %1211 = vmatprep.subr.mxu0 0.0
    %1212 = vmatpush1.msra.mxu0 %v1194
    %1213 = vmatprep.subr.mxu0 0.0
    %1214 = vmatpush1.msra.mxu0 0.0
    %1215 = vmatprep.subr.mxu0 0.0
    %1216 = vmatpush1.msra.mxu0 0.0
    %1217 = vmatprep.subr.mxu0 0.0
    %1218 = vmatpush1.msra.mxu0 0.0
    %1219 = vmatprep.subr.mxu0 0.0
    %1220 = vmatpush1.msra.mxu0 0.0
    %1221 = vmatprep.subr.mxu0 0.0
    %1222 = vmatpush1.msra.mxu0 0.0
    %1223 = vmatprep.subr.mxu0 0.0
    %1224 = vmatpush1.msra.mxu0 0.0
    %1225 = vmatprep.subr.mxu0 0.0
    %1226 = vmatpush1.msra.mxu0 0.0
    %1227 = vmatprep.subr.mxu0 0.0
    %1228 = vmatpush1.msra.mxu0 0.0
    %1229 = vmatprep.subr.mxu0 0.0
    %1230 = vmatpush1.msra.mxu0 0.0
    %1231 = vmatprep.subr.mxu0 0.0
    %1232 = vmatpush1.msra.mxu0 0.0
    %1233 = vmatprep.subr.mxu0 0.0
    %1234 = vmatpush1.msra.mxu0 0.0
    %1235 = vmatprep.subr.mxu0 0.0
    %1236 = vmatpush1.msra.mxu0 0.0
    %1237 = vmatprep.subr.mxu0 0.0
    %1238 = vmatpush1.msra.mxu0 0.0
    %1239 = vmatprep.subr.mxu0 0.0
    %1240 = vmatpush1.msra.mxu0 0.0
    %1241 = vmatprep.subr.mxu0 0.0
    %1242 = vmatpush1.msra.mxu0 0.0
    %1243 = vmatprep.subr.mxu0 0.0
    %1244 = vmatpush1.msra.mxu0 0.0
    %1245 = vmatprep.subr.mxu0 0.0
    %1246 = vmatpush1.msra.mxu0 0.0
    %1247 = vmatprep.subr.mxu0 0.0
    %1248 = vmatpush1.msra.mxu0 0.0
    %1249 = vmatprep.subr.mxu0 0.0
    %1250 = vmatpush1.msra.mxu0 0.0
    %1251 = vmatprep.subr.mxu0 0.0
    %1252 = vmatpush1.msra.mxu0 0.0
    %1253 = vmatprep.subr.mxu0 0.0
    %1254 = vmatpush1.msra.mxu0 0.0
    %1255 = vmatprep.subr.mxu0 0.0
    %1256 = vmatpush1.msra.mxu0 0.0
    %1257 = vmatprep.subr.mxu0 0.0
    %1258 = vmatpush1.msra.mxu0 0.0
    %1259 = vmatprep.subr.mxu0 0.0
    %1260 = vmatpush1.msra.mxu0 0.0
    %1261 = vmatprep.subr.mxu0 0.0
    %1262 = vmatpush1.msra.mxu0 0.0
    %1263 = vmatprep.subr.mxu0 0.0
    %1264 = vmatpush1.msra.mxu0 0.0
    %1265 = vmatprep.subr.mxu0 0.0
    %1266 = vmatpush1.msra.mxu0 0.0
    %1267 = vmatprep.subr.mxu0 0.0
    %1268 = vmatpush1.msra.mxu0 0.0
    %1269 = vmatprep.mubr.f32.mxu0 0.0
    %1270 = vmatmul.mubr.f32.gmra.mrb[0].mxu0 %v1203
    %v1271 = vpop.f32.mrb[0].mxu0
    %v1272 = vadd.f32 %v1200, %v1271
    %v1273 = vpop.f32.mrb[0].mxu0
    %1274 = vdwg.mxu0
    %v1275 = vmax.f32 %v1272, 0.0
    %v1276 = vld [vmem:[%s9] sm:$0xff]
    %v1277 = vld [vmem:[%s9 + $0x8] sm:$0xff]
    %v1278 = vld [vmem:[%s9 + $0x10] sm:$0xff]
    %v1279 = vld [vmem:[%s9 + $0x18] sm:$0xff]
    %v1280 = vld [vmem:[#allocation9] sm:$0x1]
    %v1282 = vlaneseq
    %v1283 = vshrl.u32 %v1282, 7
    %v1284 = vsub.s32 0, %v1283
    %v1285 = vrot.slane %v1280, %v1284
    %v1288 = vsel %vm284, %v1275, 0
    %1290 = vmatprep.subr.mxu0 0.0
    %1291 = vmatpush1.msra.mxu0 %v1276
    %1292 = vmatprep.subr.mxu0 0.0
    %1293 = vmatpush1.msra.mxu0 %v1277
    %1294 = vmatprep.subr.mxu0 0.0
    %1295 = vmatpush1.msra.mxu0 %v1278
    %1296 = vmatprep.subr.mxu0 0.0
    %1297 = vmatpush1.msra.mxu0 %v1279
    %1298 = vmatprep.subr.mxu0 0.0
    %1299 = vmatpush1.msra.mxu0 0.0
    %1300 = vmatprep.subr.mxu0 0.0
    %1301 = vmatpush1.msra.mxu0 0.0
    %1302 = vmatprep.subr.mxu0 0.0
    %1303 = vmatpush1.msra.mxu0 0.0
    %1304 = vmatprep.subr.mxu0 0.0
    %1305 = vmatpush1.msra.mxu0 0.0
    %1306 = vmatprep.subr.mxu0 0.0
    %1307 = vmatpush1.msra.mxu0 0.0
    %1308 = vmatprep.subr.mxu0 0.0
    %1309 = vmatpush1.msra.mxu0 0.0
    %1310 = vmatprep.subr.mxu0 0.0
    %1311 = vmatpush1.msra.mxu0 0.0
    %1312 = vmatprep.subr.mxu0 0.0
    %1313 = vmatpush1.msra.mxu0 0.0
    %1314 = vmatprep.subr.mxu0 0.0
    %1315 = vmatpush1.msra.mxu0 0.0
    %1316 = vmatprep.subr.mxu0 0.0
    %1317 = vmatpush1.msra.mxu0 0.0
    %1318 = vmatprep.subr.mxu0 0.0
    %1319 = vmatpush1.msra.mxu0 0.0
    %1320 = vmatprep.subr.mxu0 0.0
    %1321 = vmatpush1.msra.mxu0 0.0
    %1322 = vmatprep.subr.mxu0 0.0
    %1323 = vmatpush1.msra.mxu0 0.0
    %1324 = vmatprep.subr.mxu0 0.0
    %1325 = vmatpush1.msra.mxu0 0.0
    %1326 = vmatprep.subr.mxu0 0.0
    %1327 = vmatpush1.msra.mxu0 0.0
    %1328 = vmatprep.subr.mxu0 0.0
    %1329 = vmatpush1.msra.mxu0 0.0
    %1330 = vmatprep.subr.mxu0 0.0
    %1331 = vmatpush1.msra.mxu0 0.0
    %1332 = vmatprep.subr.mxu0 0.0
    %1333 = vmatpush1.msra.mxu0 0.0
    %1334 = vmatprep.subr.mxu0 0.0
    %1335 = vmatpush1.msra.mxu0 0.0
    %1336 = vmatprep.subr.mxu0 0.0
    %1337 = vmatpush1.msra.mxu0 0.0
    %1338 = vmatprep.subr.mxu0 0.0
    %1339 = vmatpush1.msra.mxu0 0.0
    %1340 = vmatprep.subr.mxu0 0.0
    %1341 = vmatpush1.msra.mxu0 0.0
    %1342 = vmatprep.subr.mxu0 0.0
    %1343 = vmatpush1.msra.mxu0 0.0
    %1344 = vmatprep.subr.mxu0 0.0
    %1345 = vmatpush1.msra.mxu0 0.0
    %1346 = vmatprep.subr.mxu0 0.0
    %1347 = vmatpush1.msra.mxu0 0.0
    %1348 = vmatprep.subr.mxu0 0.0
    %1349 = vmatpush1.msra.mxu0 0.0
    %1350 = vmatprep.subr.mxu0 0.0
    %1351 = vmatpush1.msra.mxu0 0.0
    %1352 = vmatprep.subr.mxu0 0.0
    %1353 = vmatpush1.msra.mxu0 0.0
    %1354 = vmatprep.mubr.f32.mxu0 0.0
    %1355 = vmatmul.mubr.f32.gmra.mrb[0].mxu0 %v1288
    %v1356 = vpop.f32.mrb[0].mxu0
    %v1357 = vadd.f32 %v1285, %v1356
    %v1358 = vpop.f32.mrb[0].mxu0
    %1359 = vdwg.mxu0
    %v1360 = vmax.f32 %v1357, 0.0
    %v1361 = vld [vmem:[%s11] sm:$0xff]
    %v1362 = vld [vmem:[%s11 + $0x8] sm:$0xff]
    %v1363 = vld [vmem:[%s11 + $0x10] sm:$0xff]
    %v1364 = vld [vmem:[%s11 + $0x18] sm:$0xff]
    %v1365 = vld [vmem:[%s12] sm:$0xff]
    %v1366 = vld [vmem:[%s12 + $0x8] sm:$0xff]
    %v1367 = vld [vmem:[%s12 + $0x10] sm:$0xff]
    %v1368 = vld [vmem:[%s12 + $0x18] sm:$0xff]
    %v1370 = vsel %vm284, %v1360, 0
    %1372 = vmatprep.subr.mxu0 0.0
    %1373 = vmatpush1.msra.mxu0 %v1365
    %1374 = vmatprep.subr.mxu0 0.0
    %1375 = vmatpush1.msra.mxu0 %v1366
    %1376 = vmatprep.subr.mxu0 0.0
    %1377 = vmatpush1.msra.mxu0 %v1367
    %1378 = vmatprep.subr.mxu0 0.0
    %1379 = vmatpush1.msra.mxu0 %v1368
    %1380 = vmatprep.subr.mxu0 0.0
    %1381 = vmatpush1.msra.mxu0 0.0
    %1382 = vmatprep.subr.mxu0 0.0
    %1383 = vmatpush1.msra.mxu0 0.0
    %1384 = vmatprep.subr.mxu0 0.0
    %1385 = vmatpush1.msra.mxu0 0.0
    %1386 = vmatprep.subr.mxu0 0.0
    %1387 = vmatpush1.msra.mxu0 0.0
    %1388 = vmatprep.subr.mxu0 0.0
    %1389 = vmatpush1.msra.mxu0 0.0
    %1390 = vmatprep.subr.mxu0 0.0
    %1391 = vmatpush1.msra.mxu0 0.0
    %1392 = vmatprep.subr.mxu0 0.0
    %1393 = vmatpush1.msra.mxu0 0.0
    %1394 = vmatprep.subr.mxu0 0.0
    %1395 = vmatpush1.msra.mxu0 0.0
    %1396 = vmatprep.subr.mxu0 0.0
    %1397 = vmatpush1.msra.mxu0 0.0
    %1398 = vmatprep.subr.mxu0 0.0
    %1399 = vmatpush1.msra.mxu0 0.0
    %1400 = vmatprep.subr.mxu0 0.0
    %1401 = vmatpush1.msra.mxu0 0.0
    %1402 = vmatprep.subr.mxu0 0.0
    %1403 = vmatpush1.msra.mxu0 0.0
    %1404 = vmatprep.subr.mxu0 0.0
    %1405 = vmatpush1.msra.mxu0 0.0
    %1406 = vmatprep.subr.mxu0 0.0
    %1407 = vmatpush1.msra.mxu0 0.0
    %1408 = vmatprep.subr.mxu0 0.0
    %1409 = vmatpush1.msra.mxu0 0.0
    %1410 = vmatprep.subr.mxu0 0.0
    %1411 = vmatpush1.msra.mxu0 0.0
    %1412 = vmatprep.subr.mxu0 0.0
    %1413 = vmatpush1.msra.mxu0 0.0
    %1414 = vmatprep.subr.mxu0 0.0
    %1415 = vmatpush1.msra.mxu0 0.0
    %1416 = vmatprep.subr.mxu0 0.0
    %1417 = vmatpush1.msra.mxu0 0.0
    %1418 = vmatprep.subr.mxu0 0.0
    %1419 = vmatpush1.msra.mxu0 0.0
    %1420 = vmatprep.subr.mxu0 0.0
    %1421 = vmatpush1.msra.mxu0 0.0
    %1422 = vmatprep.subr.mxu0 0.0
    %1423 = vmatpush1.msra.mxu0 0.0
    %1424 = vmatprep.subr.mxu0 0.0
    %1425 = vmatpush1.msra.mxu0 0.0
    %1426 = vmatprep.subr.mxu0 0.0
    %1427 = vmatpush1.msra.mxu0 0.0
    %1428 = vmatprep.subr.mxu0 0.0
    %1429 = vmatpush1.msra.mxu0 0.0
    %1430 = vmatprep.subr.mxu0 0.0
    %1431 = vmatpush1.msra.mxu0 0.0
    %1432 = vmatprep.subr.mxu0 0.0
    %1433 = vmatpush1.msra.mxu0 0.0
    %1434 = vmatprep.subr.mxu0 0.0
    %1435 = vmatpush1.msra.mxu0 0.0
    %1436 = vmatprep.mubr.f32.mxu0 0.0
    %1437 = vmatmul.mubr.f32.gmra.mrb[0].mxu0 %v1370
    %v1438 = vpop.f32.mrb[0].mxu0
    %v1439 = vadd.f32 0.0, %v1438
    %v1440 = vpop.f32.mrb[0].mxu0
    %1441 = vdwg.mxu0
    %1443 = vrot.lane.b32.xlu0 %v1104, 32
    %v1444 = vpop.permute.xlu0 %1443
    %v1445 = vsel %vm284, %v1444, 0
    %1447 = vmatprep.subr.mxu0 0.0
    %1448 = vmatpush1.msra.mxu0 %v1361
    %1449 = vmatprep.subr.mxu0 0.0
    %1450 = vmatpush1.msra.mxu0 %v1362
    %1451 = vmatprep.subr.mxu0 0.0
    %1452 = vmatpush1.msra.mxu0 %v1363
    %1453 = vmatprep.subr.mxu0 0.0
    %1454 = vmatpush1.msra.mxu0 %v1364
    %1455 = vmatprep.subr.mxu0 0.0
    %1456 = vmatpush1.msra.mxu0 0.0
    %1457 = vmatprep.subr.mxu0 0.0
    %1458 = vmatpush1.msra.mxu0 0.0
    %1459 = vmatprep.subr.mxu0 0.0
    %1460 = vmatpush1.msra.mxu0 0.0
    %1461 = vmatprep.subr.mxu0 0.0
    %1462 = vmatpush1.msra.mxu0 0.0
    %1463 = vmatprep.subr.mxu0 0.0
    %1464 = vmatpush1.msra.mxu0 0.0
    %1465 = vmatprep.subr.mxu0 0.0
    %1466 = vmatpush1.msra.mxu0 0.0
    %1467 = vmatprep.subr.mxu0 0.0
    %1468 = vmatpush1.msra.mxu0 0.0
    %1469 = vmatprep.subr.mxu0 0.0
    %1470 = vmatpush1.msra.mxu0 0.0
    %1471 = vmatprep.subr.mxu0 0.0
    %1472 = vmatpush1.msra.mxu0 0.0
    %1473 = vmatprep.subr.mxu0 0.0
    %1474 = vmatpush1.msra.mxu0 0.0
    %1475 = vmatprep.subr.mxu0 0.0
    %1476 = vmatpush1.msra.mxu0 0.0
    %1477 = vmatprep.subr.mxu0 0.0
    %1478 = vmatpush1.msra.mxu0 0.0
    %1479 = vmatprep.subr.mxu0 0.0
    %1480 = vmatpush1.msra.mxu0 0.0
    %1481 = vmatprep.subr.mxu0 0.0
    %1482 = vmatpush1.msra.mxu0 0.0
    %1483 = vmatprep.subr.mxu0 0.0
    %1484 = vmatpush1.msra.mxu0 0.0
    %1485 = vmatprep.subr.mxu0 0.0
    %1486 = vmatpush1.msra.mxu0 0.0
    %1487 = vmatprep.subr.mxu0 0.0
    %1488 = vmatpush1.msra.mxu0 0.0
    %1489 = vmatprep.subr.mxu0 0.0
    %1490 = vmatpush1.msra.mxu0 0.0
    %1491 = vmatprep.subr.mxu0 0.0
    %1492 = vmatpush1.msra.mxu0 0.0
    %1493 = vmatprep.subr.mxu0 0.0
    %1494 = vmatpush1.msra.mxu0 0.0
    %1495 = vmatprep.subr.mxu0 0.0
    %1496 = vmatpush1.msra.mxu0 0.0
    %1497 = vmatprep.subr.mxu0 0.0
    %1498 = vmatpush1.msra.mxu0 0.0
    %1499 = vmatprep.subr.mxu0 0.0
    %1500 = vmatpush1.msra.mxu0 0.0
    %1501 = vmatprep.subr.mxu0 0.0
    %1502 = vmatpush1.msra.mxu0 0.0
    %1503 = vmatprep.subr.mxu0 0.0
    %1504 = vmatpush1.msra.mxu0 0.0
    %1505 = vmatprep.subr.mxu0 0.0
    %1506 = vmatpush1.msra.mxu0 0.0
    %1507 = vmatprep.subr.mxu0 0.0
    %1508 = vmatpush1.msra.mxu0 0.0
    %1509 = vmatprep.subr.mxu0 0.0
    %1510 = vmatpush1.msra.mxu0 0.0
    %1511 = vmatprep.mubr.f32.mxu0 0.0
    %1512 = vmatmul.mubr.f32.gmra.mrb[0].mxu0 %v1445
    %v1513 = vpop.f32.mrb[0].mxu0
    %v1514 = vadd.f32 %v1439, %v1513
    %v1515 = vpop.f32.mrb[0].mxu0
    %1516 = vdwg.mxu0
    %v1517 = vld [vmem:[%s13] sm:$0x1]
    %v1519 = vlaneseq
    %v1520 = vshrl.u32 %v1519, 7
    %v1521 = vsub.s32 0, %v1520
    %v1522 = vrot.slane %v1517, %v1521
    %v1524 = vadd.f32 %v1514, %v1522
    %v1525 = vmax.f32 %v1524, 0.0
    %v1526 = vld [vmem:[#allocation11] sm:$0xff]
    %v1527 = vld [vmem:[#allocation11 + $0x8] sm:$0xff]
    %v1528 = vld [vmem:[#allocation11 + $0x10] sm:$0xff]
    %v1529 = vld [vmem:[#allocation11 + $0x18] sm:$0xff]
    %v1530 = vld [vmem:[%s15] sm:$0x1]
    %v1532 = vlaneseq
    %v1533 = vshrl.u32 %v1532, 7
    %v1534 = vsub.s32 0, %v1533
    %v1535 = vrot.slane %v1530, %v1534
    %v1538 = vsel %vm284, %v1525, 0
    %1540 = vmatprep.subr.mxu0 0.0
    %1541 = vmatpush1.msra.mxu0 %v1526
    %1542 = vmatprep.subr.mxu0 0.0
    %1543 = vmatpush1.msra.mxu0 %v1527
    %1544 = vmatprep.subr.mxu0 0.0
    %1545 = vmatpush1.msra.mxu0 %v1528
    %1546 = vmatprep.subr.mxu0 0.0
    %1547 = vmatpush1.msra.mxu0 %v1529
    %1548 = vmatprep.subr.mxu0 0.0
    %1549 = vmatpush1.msra.mxu0 0.0
    %1550 = vmatprep.subr.mxu0 0.0
    %1551 = vmatpush1.msra.mxu0 0.0
    %1552 = vmatprep.subr.mxu0 0.0
    %1553 = vmatpush1.msra.mxu0 0.0
    %1554 = vmatprep.subr.mxu0 0.0
    %1555 = vmatpush1.msra.mxu0 0.0
    %1556 = vmatprep.subr.mxu0 0.0
    %1557 = vmatpush1.msra.mxu0 0.0
    %1558 = vmatprep.subr.mxu0 0.0
    %1559 = vmatpush1.msra.mxu0 0.0
    %1560 = vmatprep.subr.mxu0 0.0
    %1561 = vmatpush1.msra.mxu0 0.0
    %1562 = vmatprep.subr.mxu0 0.0
    %1563 = vmatpush1.msra.mxu0 0.0
    %1564 = vmatprep.subr.mxu0 0.0
    %1565 = vmatpush1.msra.mxu0 0.0
    %1566 = vmatprep.subr.mxu0 0.0
    %1567 = vmatpush1.msra.mxu0 0.0
    %1568 = vmatprep.subr.mxu0 0.0
    %1569 = vmatpush1.msra.mxu0 0.0
    %1570 = vmatprep.subr.mxu0 0.0
    %1571 = vmatpush1.msra.mxu0 0.0
    %1572 = vmatprep.subr.mxu0 0.0
    %1573 = vmatpush1.msra.mxu0 0.0
    %1574 = vmatprep.subr.mxu0 0.0
    %1575 = vmatpush1.msra.mxu0 0.0
    %1576 = vmatprep.subr.mxu0 0.0
    %1577 = vmatpush1.msra.mxu0 0.0
    %1578 = vmatprep.subr.mxu0 0.0
    %1579 = vmatpush1.msra.mxu0 0.0
    %1580 = vmatprep.subr.mxu0 0.0
    %1581 = vmatpush1.msra.mxu0 0.0
    %1582 = vmatprep.subr.mxu0 0.0
    %1583 = vmatpush1.msra.mxu0 0.0
    %1584 = vmatprep.subr.mxu0 0.0
    %1585 = vmatpush1.msra.mxu0 0.0
    %1586 = vmatprep.subr.mxu0 0.0
    %1587 = vmatpush1.msra.mxu0 0.0
    %1588 = vmatprep.subr.mxu0 0.0
    %1589 = vmatpush1.msra.mxu0 0.0
    %1590 = vmatprep.subr.mxu0 0.0
    %1591 = vmatpush1.msra.mxu0 0.0
    %1592 = vmatprep.subr.mxu0 0.0
    %1593 = vmatpush1.msra.mxu0 0.0
    %1594 = vmatprep.subr.mxu0 0.0
    %1595 = vmatpush1.msra.mxu0 0.0
    %1596 = vmatprep.subr.mxu0 0.0
    %1597 = vmatpush1.msra.mxu0 0.0
    %1598 = vmatprep.subr.mxu0 0.0
    %1599 = vmatpush1.msra.mxu0 0.0
    %1600 = vmatprep.subr.mxu0 0.0
    %1601 = vmatpush1.msra.mxu0 0.0
    %1602 = vmatprep.subr.mxu0 0.0
    %1603 = vmatpush1.msra.mxu0 0.0
    %1604 = vmatprep.mubr.f32.mxu0 0.0
    %1605 = vmatmul.mubr.f32.gmra.mrb[0].mxu0 %v1538
    %v1606 = vpop.f32.mrb[0].mxu0
    %v1607 = vadd.f32 %v1535, %v1606
    %v1608 = vpop.f32.mrb[0].mxu0
    %1609 = vdwg.mxu0
    %v1610 = vmax.f32 %v1607, 0.0
    %v1611 = vld [vmem:[%s16] sm:$0xff]
    %v1612 = vld [vmem:[%s16 + $0x8] sm:$0xff]
    %v1613 = vld [vmem:[%s16 + $0x10] sm:$0xff]
    %v1614 = vld [vmem:[%s16 + $0x18] sm:$0xff]
    %v1615 = vld [vmem:[#allocation3] sm:$0x1]
    %v1617 = vlaneseq
    %v1618 = vshrl.u32 %v1617, 7
    %v1619 = vsub.s32 0, %v1618
    %v1620 = vrot.slane %v1615, %v1619
    %v1623 = vsel %vm284, %v1610, 0
    %1625 = vmatprep.subr.mxu0 0.0
    %1626 = vmatpush1.msra.mxu0 %v1611
    %1627 = vmatprep.subr.mxu0 0.0
    %1628 = vmatpush1.msra.mxu0 %v1612
    %1629 = vmatprep.subr.mxu0 0.0
    %1630 = vmatpush1.msra.mxu0 %v1613
    %1631 = vmatprep.subr.mxu0 0.0
    %1632 = vmatpush1.msra.mxu0 %v1614
    %1633 = vmatprep.subr.mxu0 0.0
    %1634 = vmatpush1.msra.mxu0 0.0
    %1635 = vmatprep.subr.mxu0 0.0
    %1636 = vmatpush1.msra.mxu0 0.0
    %1637 = vmatprep.subr.mxu0 0.0
    %1638 = vmatpush1.msra.mxu0 0.0
    %1639 = vmatprep.subr.mxu0 0.0
    %1640 = vmatpush1.msra.mxu0 0.0
    %1641 = vmatprep.subr.mxu0 0.0
    %1642 = vmatpush1.msra.mxu0 0.0
    %1643 = vmatprep.subr.mxu0 0.0
    %1644 = vmatpush1.msra.mxu0 0.0
    %1645 = vmatprep.subr.mxu0 0.0
    %1646 = vmatpush1.msra.mxu0 0.0
    %1647 = vmatprep.subr.mxu0 0.0
    %1648 = vmatpush1.msra.mxu0 0.0
    %1649 = vmatprep.subr.mxu0 0.0
    %1650 = vmatpush1.msra.mxu0 0.0
    %1651 = vmatprep.subr.mxu0 0.0
    %1652 = vmatpush1.msra.mxu0 0.0
    %1653 = vmatprep.subr.mxu0 0.0
    %1654 = vmatpush1.msra.mxu0 0.0
    %1655 = vmatprep.subr.mxu0 0.0
    %1656 = vmatpush1.msra.mxu0 0.0
    %1657 = vmatprep.subr.mxu0 0.0
    %1658 = vmatpush1.msra.mxu0 0.0
    %1659 = vmatprep.subr.mxu0 0.0
    %1660 = vmatpush1.msra.mxu0 0.0
    %1661 = vmatprep.subr.mxu0 0.0
    %1662 = vmatpush1.msra.mxu0 0.0
    %1663 = vmatprep.subr.mxu0 0.0
    %1664 = vmatpush1.msra.mxu0 0.0
    %1665 = vmatprep.subr.mxu0 0.0
    %1666 = vmatpush1.msra.mxu0 0.0
    %1667 = vmatprep.subr.mxu0 0.0
    %1668 = vmatpush1.msra.mxu0 0.0
    %1669 = vmatprep.subr.mxu0 0.0
    %1670 = vmatpush1.msra.mxu0 0.0
    %1671 = vmatprep.subr.mxu0 0.0
    %1672 = vmatpush1.msra.mxu0 0.0
    %1673 = vmatprep.subr.mxu0 0.0
    %1674 = vmatpush1.msra.mxu0 0.0
    %1675 = vmatprep.subr.mxu0 0.0
    %1676 = vmatpush1.msra.mxu0 0.0
    %1677 = vmatprep.subr.mxu0 0.0
    %1678 = vmatpush1.msra.mxu0 0.0
    %1679 = vmatprep.subr.mxu0 0.0
    %1680 = vmatpush1.msra.mxu0 0.0
    %1681 = vmatprep.subr.mxu0 0.0
    %1682 = vmatpush1.msra.mxu0 0.0
    %1683 = vmatprep.subr.mxu0 0.0
    %1684 = vmatpush1.msra.mxu0 0.0
    %1685 = vmatprep.subr.mxu0 0.0
    %1686 = vmatpush1.msra.mxu0 0.0
    %1687 = vmatprep.subr.mxu0 0.0
    %1688 = vmatpush1.msra.mxu0 0.0
    %1689 = vmatprep.mubr.f32.mxu0 0.0
    %1690 = vmatmul.mubr.f32.gmra.mrb[0].mxu0 %v1623
    %v1691 = vpop.f32.mrb[0].mxu0
    %v1692 = vadd.f32 %v1620, %v1691
    %v1693 = vpop.f32.mrb[0].mxu0
    %1694 = vdwg.mxu0
    %v1695 = vtanh.pop %v1692
    %vm1696 = vcmask 7168
    %1697 = vst.msk [vmem:[%s18] sm:$0xff] %vm1696, %v1695
    // Predicated region
    $region94: #{tpu_custom_call.1} parent=1 // pred_check
      _
    $region95: #{tpu_custom_call.1} parent=1 // pred_check_branch
      %1699 = sbr.rel (0) target = $region97
    $region96: #{tpu_custom_call.1} parent=1 // pred_region
      _
    $region97: #{tpu_custom_call.1} parent=1 // pred_fallthru
      _
    // Predicated region
    $region98: #{tpu_custom_call.1} parent=1 // pred_check
      _
    $region99: #{tpu_custom_call.1} parent=1 // pred_check_branch
      %1701 = sbr.rel (0) target = $region101
    $region100: #{tpu_custom_call.1} parent=1 // pred_region
      _
    $region101: #{tpu_custom_call.1} parent=1 // pred_fallthru
      _
    %1702 = vsyncpa [#allocation5], 1
    %1703 = vsyncpa [#allocation7], 1
    %1704 = vsyncpa [#allocation10], 1

</llo_original>
